<compile_context>
chip_gen: v7x
topology: tpu7x:2x2x1
jax: 0.10.0
libtpu: 0.0.40
codegen_flags: <defaults>
</compile_context>

<pallas_src>
import functools

import jax
import jax.numpy as jnp
from jax import lax
from jax.experimental import pallas as pl
from jax.experimental.pallas import tpu as pltpu


def _spatial_attention_kernel(band_ref, x_ref, o_ref,
                              sum_ref, max_ref, pad_ref,
                              *, C, H, W, K, P):
    # band_ref: VMEM (2, K, W, W) f32   banded row-conv matrices
    # x_ref:    VMEM (1, Ct, H*W)       one channel tile of one batch element
    # o_ref:    VMEM (1, H, W)          output attention map
    # sum_ref:  VMEM (1, H*W) f32       running channel sum
    # max_ref:  VMEM (1, H*W) f32       running channel max
    # pad_ref:  VMEM (2, H+2P, W) f32   vertically zero-padded [avg, max] maps
    b = pl.program_id(0)
    c_step = pl.program_id(1)
    HW = H * W

    @pl.when((b == 0) & (c_step == 0))
    def _zero_halo():
        # Scratch persists across grid steps, and the interior rows are fully
        # overwritten every finalize, so the halo only needs zeroing once.
        pad_ref[:, :P, :] = jnp.zeros((2, P, W), jnp.float32)
        pad_ref[:, P + H:, :] = jnp.zeros((2, P, W), jnp.float32)

    @pl.when(c_step == 0)
    def _init():
        sum_ref[...] = jnp.zeros((1, HW), jnp.float32)
        max_ref[...] = jnp.full((1, HW), -jnp.inf, jnp.float32)

    xs = x_ref[0].astype(jnp.float32)                     # (Ct, HW), lane-dense
    sum_ref[...] += jnp.sum(xs, axis=0, keepdims=True)
    max_ref[...] = jnp.maximum(max_ref[...], jnp.max(xs, axis=0, keepdims=True))

    @pl.when(c_step == pl.num_programs(1) - 1)
    def _finalize():
        avg = sum_ref[...] * jnp.float32(1.0 / C)          # (1, HW)
        mx = max_ref[...]                                  # (1, HW)

        # Flat -> 2D: one static row store per image row (avoids an in-kernel
        # reshape that would move lanes across sublanes).
        for h in range(H):
            pad_ref[0, P + h:P + h + 1, :] = avg[:, h * W:(h + 1) * W]
            pad_ref[1, P + h:P + h + 1, :] = mx[:, h * W:(h + 1) * W]

        # KxK "same" conv (2 in-ch -> 1 out-ch, no bias) as 2*K banded MXU
        # matmuls:  contribution(c, kh) = pad[c, kh:kh+H, :] @ band[c, kh].
        # Two independent accumulators for ILP.
        acc_a = jnp.zeros((H, W), jnp.float32)
        acc_m = jnp.zeros((H, W), jnp.float32)
        for kh in range(K):
            acc_a = acc_a + jnp.dot(pad_ref[0, kh:kh + H, :], band_ref[0, kh],
                                    preferred_element_type=jnp.float32)
            acc_m = acc_m + jnp.dot(pad_ref[1, kh:kh + H, :], band_ref[1, kh],
                                    preferred_element_type=jnp.float32)

        o_ref[0] = jax.nn.sigmoid(acc_a + acc_m).astype(o_ref.dtype)


def _pick_c_tile(C, HW, elem_bytes, max_block_bytes):
    """Largest channel tile whose (1, Ct, H*W) block stays under the budget.

    Keeps the second-to-last block dim either == C (full dim) or a multiple
    of 8 (sublane tile) so the BlockSpec stays layout-friendly.
    """
    max_ct = max(1, min(C, max_block_bytes // max(1, HW * elem_bytes)))
    if C <= max_ct:
        return C
    for t in range(max_ct, 0, -1):
        if C % t == 0 and t % 8 == 0:
            return t
    return C  # no sublane-aligned divisor fits the budget; single channel step


def spatial_attention(x, weight, kernel_size=7, *,
                      max_block_bytes=8 * 1024 * 1024):
    """x: (B, C, H, W) float, weight: (1, 2, K, K) -> (B, 1, H, W) of x.dtype."""
    assert kernel_size in (3, 7), "kernel size must be 3 or 7"
    B, C, H, W = x.shape
    K = kernel_size
    P = 3 if K == 7 else 1
    assert weight.shape == (1, 2, K, K)
    HW = H * W

    # Lane-dense view of x for the channel reduction (last dim = H*W).
    x_flat = x.reshape(B, C, HW)

    # Banded row-conv matrices: band[c, kh, j, w] = weight[0, c, kh, j - w + P]
    # (zero outside kernel support). Horizontal "same" padding is folded in.
    w2 = weight.reshape(2, K, K).astype(jnp.float32)
    j = jnp.arange(W)[:, None]
    wc = jnp.arange(W)[None, :]
    kw = j - wc + P
    valid = (kw >= 0) & (kw < K)
    band = jnp.where(valid[None, None], w2[:, :, jnp.clip(kw, 0, K - 1)], 0.0)

    c_tile = _pick_c_tile(C, HW, x.dtype.itemsize, max_block_bytes)
    nc = C // c_tile

    kernel = functools.partial(_spatial_attention_kernel,
                               C=C, H=H, W=W, K=K, P=P)

    out = pl.pallas_call(
        kernel,
        out_shape=jax.ShapeDtypeStruct((B, H, W), x.dtype),
        grid_spec=pltpu.PrefetchScalarGridSpec(
            num_scalar_prefetch=0,
            grid=(B, nc),
            in_specs=[
                pl.BlockSpec((2, K, W, W), lambda b, c: (0, 0, 0, 0)),   # band
                pl.BlockSpec((1, c_tile, HW), lambda b, c: (b, c, 0)),   # x
            ],
            out_specs=pl.BlockSpec((1, H, W), lambda b, c: (b, 0, 0)),
            scratch_shapes=[
                pltpu.VMEM((1, HW), jnp.float32),            # running sum
                pltpu.VMEM((1, HW), jnp.float32),            # running max
                pltpu.VMEM((2, H + 2 * P, W), jnp.float32),  # padded avg/max
            ],
        ),
        compiler_params=pltpu.CompilerParams(
            dimension_semantics=("parallel", "arbitrary"),
            vmem_limit_bytes=32 * 1024 * 1024,   # safe on v5e/v6e/v7x
        ),
    )(band, x_flat)
    return out.reshape(B, 1, H, W)


def _reference(x, weight):
    avg = jnp.mean(x, axis=1, keepdims=True)
    mx = jnp.max(x, axis=1, keepdims=True)
    cat = jnp.concatenate([avg, mx], axis=1)
    K = weight.shape[-1]
    P = 3 if K == 7 else 1
    y = lax.conv_general_dilated(
        cat, weight, window_strides=(1, 1), padding=[(P, P), (P, P)],
        dimension_numbers=("NCHW", "OIHW", "NCHW"),
        precision=lax.Precision.HIGHEST)
    return jax.nn.sigmoid(y)


if __name__ == "__main__":
    key = jax.random.PRNGKey(0)
    kx, kwt, kx2 = jax.random.split(key, 3)

    K = 7
    fan_in = 2 * K * K
    bound = 1.0 / (fan_in ** 0.5)   # PyTorch kaiming_uniform(a=sqrt(5)) default
    weight = jax.random.uniform(kwt, (1, 2, K, K), dtype=jnp.float32,
                                minval=-bound, maxval=bound)

    # Case 1: small CBAM-style input (single channel step).
    B, C, H, W = 2, 4, 16, 16
    x = jax.random.normal(kx, (B, C, H, W), dtype=jnp.float32)
    out = jax.block_until_ready(spatial_attention(x, weight, kernel_size=K))
    ref = _reference(x, weight)
    assert out.shape == (B, 1, H, W)
    # Tolerance covers MXU f32 multi-pass differences vs the XLA conv.
    assert jnp.allclose(out, ref, atol=2e-3, rtol=2e-3), "mismatch (case 1)"

    # Case 2: more channels + a small block budget to force the streamed
    # multi-step channel reduction (accumulator init/finalize path).
    B2, C2 = 2, 32
    x2 = jax.random.normal(kx2, (B2, C2, H, W), dtype=jnp.float32)
    out2 = jax.block_until_ready(
        spatial_attention(x2, weight, kernel_size=K,
                          max_block_bytes=8 * H * W * 4))   # -> c_tile = 8
    ref2 = _reference(x2, weight)
    assert out2.shape == (B2, 1, H, W)
    assert jnp.allclose(out2, ref2, atol=2e-3, rtol=2e-3), "mismatch (case 2)"

    print("KERNEL_OK")
</pallas_src>

<mosaic_0001>
module attributes {stable_mosaic.version = 11 : i64} {
  func.func @_spatial_attention_kernel(%arg0: i32, %arg1: i32, %arg2: memref<2x7x16x16xf32, #tpu.memory_space<vmem>>, %arg3: memref<1x4x256xf32, #tpu.memory_space<vmem>>, %arg4: memref<1x16x16xf32, #tpu.memory_space<vmem>>, %arg5: memref<1x256xf32, #tpu.memory_space<vmem>>, %arg6: memref<1x256xf32, #tpu.memory_space<vmem>>, %arg7: memref<2x22x16xf32, #tpu.memory_space<vmem>>) attributes {dimension_semantics = [#tpu.dimension_semantics<parallel>, #tpu.dimension_semantics<arbitrary>], iteration_bounds = array<i64: 2, 1>, scalar_prefetch = 0 : i64, scratch_operands = 3 : i64, tpu.core_type = #tpu.core_type<tc>, window_params = [{pipeline_mode = #tpu.pipeline_mode<synchronous>, transform_indices = @transform_0, window_bounds = array<i64: 2, 7, 16, 16>}, {transform_indices = @transform_1, window_bounds = array<i64: 1, 4, 256>}, {transform_indices = @transform_2, window_bounds = array<i64: 1, 16, 16>}]} {
    %c0_i32 = arith.constant 0 : i32
    %0 = arith.cmpi eq, %arg0, %c0_i32 : i32
    %c0_i32_0 = arith.constant 0 : i32
    %1 = arith.cmpi eq, %arg1, %c0_i32_0 : i32
    %2 = arith.andi %0, %1 : i1
    %3 = arith.extui %2 : i1 to i32
    %c0_i32_1 = arith.constant 0 : i32
    %4 = arith.cmpi ne, %3, %c0_i32_1 : i32
    scf.if %4 {
      %cst_17 = arith.constant 0.000000e+00 : f32
      %23 = vector.broadcast %cst_17 : f32 to vector<2x3x16xf32>
      %c0_18 = arith.constant 0 : index
      %c0_19 = arith.constant 0 : index
      %c0_20 = arith.constant 0 : index
      %24 = vector.load %arg7[%c0_18, %c0_19, %c0_20] : memref<2x22x16xf32, #tpu.memory_space<vmem>>, vector<2x3x16xf32>
      tpu.vector_store %arg7[%c0_18, %c0_19, %c0_20], %23 {strides = array<i32>} : memref<2x22x16xf32, #tpu.memory_space<vmem>>, vector<2x3x16xf32>,
      %cst_21 = arith.constant 0.000000e+00 : f32
      %25 = vector.broadcast %cst_21 : f32 to vector<2x3x16xf32>
      %c0_22 = arith.constant 0 : index
      %c19 = arith.constant 19 : index
      %c0_23 = arith.constant 0 : index
      %26 = vector.load %arg7[%c0_22, %c19, %c0_23] : memref<2x22x16xf32, #tpu.memory_space<vmem>>, vector<2x3x16xf32>
      tpu.vector_store %arg7[%c0_22, %c19, %c0_23], %25 {strides = array<i32>} : memref<2x22x16xf32, #tpu.memory_space<vmem>>, vector<2x3x16xf32>,
    } else {
    }
    %c0_i32_2 = arith.constant 0 : i32
    %5 = arith.cmpi eq, %arg1, %c0_i32_2 : i32
    %6 = arith.extui %5 : i1 to i32
    %c0_i32_3 = arith.constant 0 : i32
    %7 = arith.cmpi ne, %6, %c0_i32_3 : i32
    scf.if %7 {
      %cst_17 = arith.constant 0.000000e+00 : f32
      %23 = vector.broadcast %cst_17 : f32 to vector<1x256xf32>
      %c0_18 = arith.constant 0 : index
      %c0_19 = arith.constant 0 : index
      %24 = vector.load %arg5[%c0_18, %c0_19] : memref<1x256xf32, #tpu.memory_space<vmem>>, vector<1x256xf32>
      tpu.vector_store %arg5[%c0_18, %c0_19], %23 {strides = array<i32>} : memref<1x256xf32, #tpu.memory_space<vmem>>, vector<1x256xf32>,
      %cst_20 = arith.constant 0xFF800000 : f32
      %25 = vector.broadcast %cst_20 : f32 to vector<1x256xf32>
      %c0_21 = arith.constant 0 : index
      %c0_22 = arith.constant 0 : index
      %26 = vector.load %arg6[%c0_21, %c0_22] : memref<1x256xf32, #tpu.memory_space<vmem>>, vector<1x256xf32>
      tpu.vector_store %arg6[%c0_21, %c0_22], %25 {strides = array<i32>} : memref<1x256xf32, #tpu.memory_space<vmem>>, vector<1x256xf32>,
    } else {
    }
    %c0 = arith.constant 0 : index
    %c0_4 = arith.constant 0 : index
    %c0_5 = arith.constant 0 : index
    %8 = vector.load %arg3[%c0, %c0_4, %c0_5] : memref<1x4x256xf32, #tpu.memory_space<vmem>>, vector<1x4x256xf32>
    %9 = vector.shape_cast %8 : vector<1x4x256xf32> to vector<4x256xf32>
    %c0_6 = arith.constant 0 : index
    %c0_7 = arith.constant 0 : index
    %10 = vector.load %arg5[%c0_6, %c0_7] : memref<1x256xf32, #tpu.memory_space<vmem>>, vector<1x256xf32>
    %cst = arith.constant dense<0.000000e+00> : vector<256xf32>
    %11 = vector.multi_reduction <add>, %9, %cst [0] : vector<4x256xf32> to vector<256xf32>
    %12 = vector.shape_cast %11 : vector<256xf32> to vector<1x256xf32>
    %13 = arith.addf %10, %12 : vector<1x256xf32>
    %c0_8 = arith.constant 0 : index
    %c0_9 = arith.constant 0 : index
    %14 = vector.load %arg5[%c0_8, %c0_9] : memref<1x256xf32, #tpu.memory_space<vmem>>, vector<1x256xf32>
    tpu.vector_store %arg5[%c0_8, %c0_9], %13 {strides = array<i32>} : memref<1x256xf32, #tpu.memory_space<vmem>>, vector<1x256xf32>,
    %c0_10 = arith.constant 0 : index
    %c0_11 = arith.constant 0 : index
    %15 = vector.load %arg6[%c0_10, %c0_11] : memref<1x256xf32, #tpu.memory_space<vmem>>, vector<1x256xf32>
    %cst_12 = arith.constant dense<0xFF800000> : vector<256xf32>
    %16 = vector.multi_reduction <maximumf>, %9, %cst_12 [0] : vector<4x256xf32> to vector<256xf32>
    %17 = vector.shape_cast %16 : vector<256xf32> to vector<1x256xf32>
    %18 = arith.maximumf %15, %17 : vector<1x256xf32>
    %c0_13 = arith.constant 0 : index
    %c0_14 = arith.constant 0 : index
    %19 = vector.load %arg6[%c0_13, %c0_14] : memref<1x256xf32, #tpu.memory_space<vmem>>, vector<1x256xf32>
    tpu.vector_store %arg6[%c0_13, %c0_14], %18 {strides = array<i32>} : memref<1x256xf32, #tpu.memory_space<vmem>>, vector<1x256xf32>,
    %c0_i32_15 = arith.constant 0 : i32
    %20 = arith.cmpi eq, %arg1, %c0_i32_15 : i32
    %21 = arith.extui %20 : i1 to i32
    %c0_i32_16 = arith.constant 0 : i32
    %22 = arith.cmpi ne, %21, %c0_i32_16 : i32
    scf.if %22 {
      %c0_17 = arith.constant 0 : index
      %c0_18 = arith.constant 0 : index
      %23 = vector.load %arg5[%c0_17, %c0_18] : memref<1x256xf32, #tpu.memory_space<vmem>>, vector<1x256xf32>
      %cst_19 = arith.constant 2.500000e-01 : f32
      %24 = vector.broadcast %cst_19 : f32 to vector<1x256xf32>
      %25 = arith.mulf %23, %24 : vector<1x256xf32>
      %c0_20 = arith.constant 0 : index
      %c0_21 = arith.constant 0 : index
      %26 = vector.load %arg6[%c0_20, %c0_21] : memref<1x256xf32, #tpu.memory_space<vmem>>, vector<1x256xf32>
      %27 = vector.extract_strided_slice %25 {offsets = [0, 0], sizes = [1, 16], strides = [1, 1]} : vector<1x256xf32> to vector<1x16xf32>
      %c0_22 = arith.constant 0 : index
      %c3 = arith.constant 3 : index
      %c0_23 = arith.constant 0 : index
      %28 = vector.load %arg7[%c0_22, %c3, %c0_23] : memref<2x22x16xf32, #tpu.memory_space<vmem>>, vector<1x1x16xf32>
      %29 = vector.shape_cast %28 : vector<1x1x16xf32> to vector<1x16xf32>
      %30 = vector.shape_cast %27 : vector<1x16xf32> to vector<1x1x16xf32>
      tpu.vector_store %arg7[%c0_22, %c3, %c0_23], %30 {strides = array<i32>} : memref<2x22x16xf32, #tpu.memory_space<vmem>>, vector<1x1x16xf32>,
      %31 = vector.extract_strided_slice %26 {offsets = [0, 0], sizes = [1, 16], strides = [1, 1]} : vector<1x256xf32> to vector<1x16xf32>
      %c1 = arith.constant 1 : index
      %c3_24 = arith.constant 3 : index
      %c0_25 = arith.constant 0 : index
      %32 = vector.load %arg7[%c1, %c3_24, %c0_25] : memref<2x22x16xf32, #tpu.memory_space<vmem>>, vector<1x1x16xf32>
      %33 = vector.shape_cast %32 : vector<1x1x16xf32> to vector<1x16xf32>
      %34 = vector.shape_cast %31 : vector<1x16xf32> to vector<1x1x16xf32>
      tpu.vector_store %arg7[%c1, %c3_24, %c0_25], %34 {strides = array<i32>} : memref<2x22x16xf32, #tpu.memory_space<vmem>>, vector<1x1x16xf32>,
      %35 = vector.extract_strided_slice %25 {offsets = [0, 16], sizes = [1, 16], strides = [1, 1]} : vector<1x256xf32> to vector<1x16xf32>
      %c0_26 = arith.constant 0 : index
      %c4 = arith.constant 4 : index
      %c0_27 = arith.constant 0 : index
      %36 = vector.load %arg7[%c0_26, %c4, %c0_27] : memref<2x22x16xf32, #tpu.memory_space<vmem>>, vector<1x1x16xf32>
      %37 = vector.shape_cast %36 : vector<1x1x16xf32> to vector<1x16xf32>
      %38 = vector.shape_cast %35 : vector<1x16xf32> to vector<1x1x16xf32>
      tpu.vector_store %arg7[%c0_26, %c4, %c0_27], %38 {strides = array<i32>} : memref<2x22x16xf32, #tpu.memory_space<vmem>>, vector<1x1x16xf32>,
      %39 = vector.extract_strided_slice %26 {offsets = [0, 16], sizes = [1, 16], strides = [1, 1]} : vector<1x256xf32> to vector<1x16xf32>
      %c1_28 = arith.constant 1 : index
      %c4_29 = arith.constant 4 : index
      %c0_30 = arith.constant 0 : index
      %40 = vector.load %arg7[%c1_28, %c4_29, %c0_30] : memref<2x22x16xf32, #tpu.memory_space<vmem>>, vector<1x1x16xf32>
      %41 = vector.shape_cast %40 : vector<1x1x16xf32> to vector<1x16xf32>
      %42 = vector.shape_cast %39 : vector<1x16xf32> to vector<1x1x16xf32>
      tpu.vector_store %arg7[%c1_28, %c4_29, %c0_30], %42 {strides = array<i32>} : memref<2x22x16xf32, #tpu.memory_space<vmem>>, vector<1x1x16xf32>,
      %43 = vector.extract_strided_slice %25 {offsets = [0, 32], sizes = [1, 16], strides = [1, 1]} : vector<1x256xf32> to vector<1x16xf32>
      %c0_31 = arith.constant 0 : index
      %c5 = arith.constant 5 : index
      %c0_32 = arith.constant 0 : index
      %44 = vector.load %arg7[%c0_31, %c5, %c0_32] : memref<2x22x16xf32, #tpu.memory_space<vmem>>, vector<1x1x16xf32>
      %45 = vector.shape_cast %44 : vector<1x1x16xf32> to vector<1x16xf32>
      %46 = vector.shape_cast %43 : vector<1x16xf32> to vector<1x1x16xf32>
      tpu.vector_store %arg7[%c0_31, %c5, %c0_32], %46 {strides = array<i32>} : memref<2x22x16xf32, #tpu.memory_space<vmem>>, vector<1x1x16xf32>,
      %47 = vector.extract_strided_slice %26 {offsets = [0, 32], sizes = [1, 16], strides = [1, 1]} : vector<1x256xf32> to vector<1x16xf32>
      %c1_33 = arith.constant 1 : index
      %c5_34 = arith.constant 5 : index
      %c0_35 = arith.constant 0 : index
      %48 = vector.load %arg7[%c1_33, %c5_34, %c0_35] : memref<2x22x16xf32, #tpu.memory_space<vmem>>, vector<1x1x16xf32>
      %49 = vector.shape_cast %48 : vector<1x1x16xf32> to vector<1x16xf32>
      %50 = vector.shape_cast %47 : vector<1x16xf32> to vector<1x1x16xf32>
      tpu.vector_store %arg7[%c1_33, %c5_34, %c0_35], %50 {strides = array<i32>} : memref<2x22x16xf32, #tpu.memory_space<vmem>>, vector<1x1x16xf32>,
      %51 = vector.extract_strided_slice %25 {offsets = [0, 48], sizes = [1, 16], strides = [1, 1]} : vector<1x256xf32> to vector<1x16xf32>
      %c0_36 = arith.constant 0 : index
      %c6 = arith.constant 6 : index
      %c0_37 = arith.constant 0 : index
      %52 = vector.load %arg7[%c0_36, %c6, %c0_37] : memref<2x22x16xf32, #tpu.memory_space<vmem>>, vector<1x1x16xf32>
      %53 = vector.shape_cast %52 : vector<1x1x16xf32> to vector<1x16xf32>
      %54 = vector.shape_cast %51 : vector<1x16xf32> to vector<1x1x16xf32>
      tpu.vector_store %arg7[%c0_36, %c6, %c0_37], %54 {strides = array<i32>} : memref<2x22x16xf32, #tpu.memory_space<vmem>>, vector<1x1x16xf32>,
      %55 = vector.extract_strided_slice %26 {offsets = [0, 48], sizes = [1, 16], strides = [1, 1]} : vector<1x256xf32> to vector<1x16xf32>
      %c1_38 = arith.constant 1 : index
      %c6_39 = arith.constant 6 : index
      %c0_40 = arith.constant 0 : index
      %56 = vector.load %arg7[%c1_38, %c6_39, %c0_40] : memref<2x22x16xf32, #tpu.memory_space<vmem>>, vector<1x1x16xf32>
      %57 = vector.shape_cast %56 : vector<1x1x16xf32> to vector<1x16xf32>
      %58 = vector.shape_cast %55 : vector<1x16xf32> to vector<1x1x16xf32>
      tpu.vector_store %arg7[%c1_38, %c6_39, %c0_40], %58 {strides = array<i32>} : memref<2x22x16xf32, #tpu.memory_space<vmem>>, vector<1x1x16xf32>,
      %59 = vector.extract_strided_slice %25 {offsets = [0, 64], sizes = [1, 16], strides = [1, 1]} : vector<1x256xf32> to vector<1x16xf32>
      %c0_41 = arith.constant 0 : index
      %c7 = arith.constant 7 : index
      %c0_42 = arith.constant 0 : index
      %60 = vector.load %arg7[%c0_41, %c7, %c0_42] : memref<2x22x16xf32, #tpu.memory_space<vmem>>, vector<1x1x16xf32>
      %61 = vector.shape_cast %60 : vector<1x1x16xf32> to vector<1x16xf32>
      %62 = vector.shape_cast %59 : vector<1x16xf32> to vector<1x1x16xf32>
      tpu.vector_store %arg7[%c0_41, %c7, %c0_42], %62 {strides = array<i32>} : memref<2x22x16xf32, #tpu.memory_space<vmem>>, vector<1x1x16xf32>,
      %63 = vector.extract_strided_slice %26 {offsets = [0, 64], sizes = [1, 16], strides = [1, 1]} : vector<1x256xf32> to vector<1x16xf32>
      %c1_43 = arith.constant 1 : index
      %c7_44 = arith.constant 7 : index
      %c0_45 = arith.constant 0 : index
      %64 = vector.load %arg7[%c1_43, %c7_44, %c0_45] : memref<2x22x16xf32, #tpu.memory_space<vmem>>, vector<1x1x16xf32>
      %65 = vector.shape_cast %64 : vector<1x1x16xf32> to vector<1x16xf32>
      %66 = vector.shape_cast %63 : vector<1x16xf32> to vector<1x1x16xf32>
      tpu.vector_store %arg7[%c1_43, %c7_44, %c0_45], %66 {strides = array<i32>} : memref<2x22x16xf32, #tpu.memory_space<vmem>>, vector<1x1x16xf32>,
      %67 = vector.extract_strided_slice %25 {offsets = [0, 80], sizes = [1, 16], strides = [1, 1]} : vector<1x256xf32> to vector<1x16xf32>
      %c0_46 = arith.constant 0 : index
      %c8 = arith.constant 8 : index
      %c0_47 = arith.constant 0 : index
      %68 = vector.load %arg7[%c0_46, %c8, %c0_47] : memref<2x22x16xf32, #tpu.memory_space<vmem>>, vector<1x1x16xf32>
      %69 = vector.shape_cast %68 : vector<1x1x16xf32> to vector<1x16xf32>
      %70 = vector.shape_cast %67 : vector<1x16xf32> to vector<1x1x16xf32>
      tpu.vector_store %arg7[%c0_46, %c8, %c0_47], %70 {strides = array<i32>} : memref<2x22x16xf32, #tpu.memory_space<vmem>>, vector<1x1x16xf32>,
      %71 = vector.extract_strided_slice %26 {offsets = [0, 80], sizes = [1, 16], strides = [1, 1]} : vector<1x256xf32> to vector<1x16xf32>
      %c1_48 = arith.constant 1 : index
      %c8_49 = arith.constant 8 : index
      %c0_50 = arith.constant 0 : index
      %72 = vector.load %arg7[%c1_48, %c8_49, %c0_50] : memref<2x22x16xf32, #tpu.memory_space<vmem>>, vector<1x1x16xf32>
      %73 = vector.shape_cast %72 : vector<1x1x16xf32> to vector<1x16xf32>
      %74 = vector.shape_cast %71 : vector<1x16xf32> to vector<1x1x16xf32>
      tpu.vector_store %arg7[%c1_48, %c8_49, %c0_50], %74 {strides = array<i32>} : memref<2x22x16xf32, #tpu.memory_space<vmem>>, vector<1x1x16xf32>,
      %75 = vector.extract_strided_slice %25 {offsets = [0, 96], sizes = [1, 16], strides = [1, 1]} : vector<1x256xf32> to vector<1x16xf32>
      %c0_51 = arith.constant 0 : index
      %c9 = arith.constant 9 : index
      %c0_52 = arith.constant 0 : index
      %76 = vector.load %arg7[%c0_51, %c9, %c0_52] : memref<2x22x16xf32, #tpu.memory_space<vmem>>, vector<1x1x16xf32>
      %77 = vector.shape_cast %76 : vector<1x1x16xf32> to vector<1x16xf32>
      %78 = vector.shape_cast %75 : vector<1x16xf32> to vector<1x1x16xf32>
      tpu.vector_store %arg7[%c0_51, %c9, %c0_52], %78 {strides = array<i32>} : memref<2x22x16xf32, #tpu.memory_space<vmem>>, vector<1x1x16xf32>,
      %79 = vector.extract_strided_slice %26 {offsets = [0, 96], sizes = [1, 16], strides = [1, 1]} : vector<1x256xf32> to vector<1x16xf32>
      %c1_53 = arith.constant 1 : index
      %c9_54 = arith.constant 9 : index
      %c0_55 = arith.constant 0 : index
      %80 = vector.load %arg7[%c1_53, %c9_54, %c0_55] : memref<2x22x16xf32, #tpu.memory_space<vmem>>, vector<1x1x16xf32>
      %81 = vector.shape_cast %80 : vector<1x1x16xf32> to vector<1x16xf32>
      %82 = vector.shape_cast %79 : vector<1x16xf32> to vector<1x1x16xf32>
      tpu.vector_store %arg7[%c1_53, %c9_54, %c0_55], %82 {strides = array<i32>} : memref<2x22x16xf32, #tpu.memory_space<vmem>>, vector<1x1x16xf32>,
      %83 = vector.extract_strided_slice %25 {offsets = [0, 112], sizes = [1, 16], strides = [1, 1]} : vector<1x256xf32> to vector<1x16xf32>
      %c0_56 = arith.constant 0 : index
      %c10 = arith.constant 10 : index
      %c0_57 = arith.constant 0 : index
      %84 = vector.load %arg7[%c0_56, %c10, %c0_57] : memref<2x22x16xf32, #tpu.memory_space<vmem>>, vector<1x1x16xf32>
      %85 = vector.shape_cast %84 : vector<1x1x16xf32> to vector<1x16xf32>
      %86 = vector.shape_cast %83 : vector<1x16xf32> to vector<1x1x16xf32>
      tpu.vector_store %arg7[%c0_56, %c10, %c0_57], %86 {strides = array<i32>} : memref<2x22x16xf32, #tpu.memory_space<vmem>>, vector<1x1x16xf32>,
      %87 = vector.extract_strided_slice %26 {offsets = [0, 112], sizes = [1, 16], strides = [1, 1]} : vector<1x256xf32> to vector<1x16xf32>
      %c1_58 = arith.constant 1 : index
      %c10_59 = arith.constant 10 : index
      %c0_60 = arith.constant 0 : index
      %88 = vector.load %arg7[%c1_58, %c10_59, %c0_60] : memref<2x22x16xf32, #tpu.memory_space<vmem>>, vector<1x1x16xf32>
      %89 = vector.shape_cast %88 : vector<1x1x16xf32> to vector<1x16xf32>
      %90 = vector.shape_cast %87 : vector<1x16xf32> to vector<1x1x16xf32>
      tpu.vector_store %arg7[%c1_58, %c10_59, %c0_60], %90 {strides = array<i32>} : memref<2x22x16xf32, #tpu.memory_space<vmem>>, vector<1x1x16xf32>,
      %91 = vector.extract_strided_slice %25 {offsets = [0, 128], sizes = [1, 16], strides = [1, 1]} : vector<1x256xf32> to vector<1x16xf32>
      %c0_61 = arith.constant 0 : index
      %c11 = arith.constant 11 : index
      %c0_62 = arith.constant 0 : index
      %92 = vector.load %arg7[%c0_61, %c11, %c0_62] : memref<2x22x16xf32, #tpu.memory_space<vmem>>, vector<1x1x16xf32>
      %93 = vector.shape_cast %92 : vector<1x1x16xf32> to vector<1x16xf32>
      %94 = vector.shape_cast %91 : vector<1x16xf32> to vector<1x1x16xf32>
      tpu.vector_store %arg7[%c0_61, %c11, %c0_62], %94 {strides = array<i32>} : memref<2x22x16xf32, #tpu.memory_space<vmem>>, vector<1x1x16xf32>,
      %95 = vector.extract_strided_slice %26 {offsets = [0, 128], sizes = [1, 16], strides = [1, 1]} : vector<1x256xf32> to vector<1x16xf32>
      %c1_63 = arith.constant 1 : index
      %c11_64 = arith.constant 11 : index
      %c0_65 = arith.constant 0 : index
      %96 = vector.load %arg7[%c1_63, %c11_64, %c0_65] : memref<2x22x16xf32, #tpu.memory_space<vmem>>, vector<1x1x16xf32>
      %97 = vector.shape_cast %96 : vector<1x1x16xf32> to vector<1x16xf32>
      %98 = vector.shape_cast %95 : vector<1x16xf32> to vector<1x1x16xf32>
      tpu.vector_store %arg7[%c1_63, %c11_64, %c0_65], %98 {strides = array<i32>} : memref<2x22x16xf32, #tpu.memory_space<vmem>>, vector<1x1x16xf32>,
      %99 = vector.extract_strided_slice %25 {offsets = [0, 144], sizes = [1, 16], strides = [1, 1]} : vector<1x256xf32> to vector<1x16xf32>
      %c0_66 = arith.constant 0 : index
      %c12 = arith.constant 12 : index
      %c0_67 = arith.constant 0 : index
      %100 = vector.load %arg7[%c0_66, %c12, %c0_67] : memref<2x22x16xf32, #tpu.memory_space<vmem>>, vector<1x1x16xf32>
      %101 = vector.shape_cast %100 : vector<1x1x16xf32> to vector<1x16xf32>
      %102 = vector.shape_cast %99 : vector<1x16xf32> to vector<1x1x16xf32>
      tpu.vector_store %arg7[%c0_66, %c12, %c0_67], %102 {strides = array<i32>} : memref<2x22x16xf32, #tpu.memory_space<vmem>>, vector<1x1x16xf32>,
      %103 = vector.extract_strided_slice %26 {offsets = [0, 144], sizes = [1, 16], strides = [1, 1]} : vector<1x256xf32> to vector<1x16xf32>
      %c1_68 = arith.constant 1 : index
      %c12_69 = arith.constant 12 : index
      %c0_70 = arith.constant 0 : index
      %104 = vector.load %arg7[%c1_68, %c12_69, %c0_70] : memref<2x22x16xf32, #tpu.memory_space<vmem>>, vector<1x1x16xf32>
      %105 = vector.shape_cast %104 : vector<1x1x16xf32> to vector<1x16xf32>
      %106 = vector.shape_cast %103 : vector<1x16xf32> to vector<1x1x16xf32>
      tpu.vector_store %arg7[%c1_68, %c12_69, %c0_70], %106 {strides = array<i32>} : memref<2x22x16xf32, #tpu.memory_space<vmem>>, vector<1x1x16xf32>,
      %107 = vector.extract_strided_slice %25 {offsets = [0, 160], sizes = [1, 16], strides = [1, 1]} : vector<1x256xf32> to vector<1x16xf32>
      %c0_71 = arith.constant 0 : index
      %c13 = arith.constant 13 : index
      %c0_72 = arith.constant 0 : index
      %108 = vector.load %arg7[%c0_71, %c13, %c0_72] : memref<2x22x16xf32, #tpu.memory_space<vmem>>, vector<1x1x16xf32>
      %109 = vector.shape_cast %108 : vector<1x1x16xf32> to vector<1x16xf32>
      %110 = vector.shape_cast %107 : vector<1x16xf32> to vector<1x1x16xf32>
      tpu.vector_store %arg7[%c0_71, %c13, %c0_72], %110 {strides = array<i32>} : memref<2x22x16xf32, #tpu.memory_space<vmem>>, vector<1x1x16xf32>,
      %111 = vector.extract_strided_slice %26 {offsets = [0, 160], sizes = [1, 16], strides = [1, 1]} : vector<1x256xf32> to vector<1x16xf32>
      %c1_73 = arith.constant 1 : index
      %c13_74 = arith.constant 13 : index
      %c0_75 = arith.constant 0 : index
      %112 = vector.load %arg7[%c1_73, %c13_74, %c0_75] : memref<2x22x16xf32, #tpu.memory_space<vmem>>, vector<1x1x16xf32>
      %113 = vector.shape_cast %112 : vector<1x1x16xf32> to vector<1x16xf32>
      %114 = vector.shape_cast %111 : vector<1x16xf32> to vector<1x1x16xf32>
      tpu.vector_store %arg7[%c1_73, %c13_74, %c0_75], %114 {strides = array<i32>} : memref<2x22x16xf32, #tpu.memory_space<vmem>>, vector<1x1x16xf32>,
      %115 = vector.extract_strided_slice %25 {offsets = [0, 176], sizes = [1, 16], strides = [1, 1]} : vector<1x256xf32> to vector<1x16xf32>
      %c0_76 = arith.constant 0 : index
      %c14 = arith.constant 14 : index
      %c0_77 = arith.constant 0 : index
      %116 = vector.load %arg7[%c0_76, %c14, %c0_77] : memref<2x22x16xf32, #tpu.memory_space<vmem>>, vector<1x1x16xf32>
      %117 = vector.shape_cast %116 : vector<1x1x16xf32> to vector<1x16xf32>
      %118 = vector.shape_cast %115 : vector<1x16xf32> to vector<1x1x16xf32>
      tpu.vector_store %arg7[%c0_76, %c14, %c0_77], %118 {strides = array<i32>} : memref<2x22x16xf32, #tpu.memory_space<vmem>>, vector<1x1x16xf32>,
      %119 = vector.extract_strided_slice %26 {offsets = [0, 176], sizes = [1, 16], strides = [1, 1]} : vector<1x256xf32> to vector<1x16xf32>
      %c1_78 = arith.constant 1 : index
      %c14_79 = arith.constant 14 : index
      %c0_80 = arith.constant 0 : index
      %120 = vector.load %arg7[%c1_78, %c14_79, %c0_80] : memref<2x22x16xf32, #tpu.memory_space<vmem>>, vector<1x1x16xf32>
      %121 = vector.shape_cast %120 : vector<1x1x16xf32> to vector<1x16xf32>
      %122 = vector.shape_cast %119 : vector<1x16xf32> to vector<1x1x16xf32>
      tpu.vector_store %arg7[%c1_78, %c14_79, %c0_80], %122 {strides = array<i32>} : memref<2x22x16xf32, #tpu.memory_space<vmem>>, vector<1x1x16xf32>,
      %123 = vector.extract_strided_slice %25 {offsets = [0, 192], sizes = [1, 16], strides = [1, 1]} : vector<1x256xf32> to vector<1x16xf32>
      %c0_81 = arith.constant 0 : index
      %c15 = arith.constant 15 : index
      %c0_82 = arith.constant 0 : index
      %124 = vector.load %arg7[%c0_81, %c15, %c0_82] : memref<2x22x16xf32, #tpu.memory_space<vmem>>, vector<1x1x16xf32>
      %125 = vector.shape_cast %124 : vector<1x1x16xf32> to vector<1x16xf32>
      %126 = vector.shape_cast %123 : vector<1x16xf32> to vector<1x1x16xf32>
      tpu.vector_store %arg7[%c0_81, %c15, %c0_82], %126 {strides = array<i32>} : memref<2x22x16xf32, #tpu.memory_space<vmem>>, vector<1x1x16xf32>,
      %127 = vector.extract_strided_slice %26 {offsets = [0, 192], sizes = [1, 16], strides = [1, 1]} : vector<1x256xf32> to vector<1x16xf32>
      %c1_83 = arith.constant 1 : index
      %c15_84 = arith.constant 15 : index
      %c0_85 = arith.constant 0 : index
      %128 = vector.load %arg7[%c1_83, %c15_84, %c0_85] : memref<2x22x16xf32, #tpu.memory_space<vmem>>, vector<1x1x16xf32>
      %129 = vector.shape_cast %128 : vector<1x1x16xf32> to vector<1x16xf32>
      %130 = vector.shape_cast %127 : vector<1x16xf32> to vector<1x1x16xf32>
      tpu.vector_store %arg7[%c1_83, %c15_84, %c0_85], %130 {strides = array<i32>} : memref<2x22x16xf32, #tpu.memory_space<vmem>>, vector<1x1x16xf32>,
      %131 = vector.extract_strided_slice %25 {offsets = [0, 208], sizes = [1, 16], strides = [1, 1]} : vector<1x256xf32> to vector<1x16xf32>
      %c0_86 = arith.constant 0 : index
      %c16 = arith.constant 16 : index
      %c0_87 = arith.constant 0 : index
      %132 = vector.load %arg7[%c0_86, %c16, %c0_87] : memref<2x22x16xf32, #tpu.memory_space<vmem>>, vector<1x1x16xf32>
      %133 = vector.shape_cast %132 : vector<1x1x16xf32> to vector<1x16xf32>
      %134 = vector.shape_cast %131 : vector<1x16xf32> to vector<1x1x16xf32>
      tpu.vector_store %arg7[%c0_86, %c16, %c0_87], %134 {strides = array<i32>} : memref<2x22x16xf32, #tpu.memory_space<vmem>>, vector<1x1x16xf32>,
      %135 = vector.extract_strided_slice %26 {offsets = [0, 208], sizes = [1, 16], strides = [1, 1]} : vector<1x256xf32> to vector<1x16xf32>
      %c1_88 = arith.constant 1 : index
      %c16_89 = arith.constant 16 : index
      %c0_90 = arith.constant 0 : index
      %136 = vector.load %arg7[%c1_88, %c16_89, %c0_90] : memref<2x22x16xf32, #tpu.memory_space<vmem>>, vector<1x1x16xf32>
      %137 = vector.shape_cast %136 : vector<1x1x16xf32> to vector<1x16xf32>
      %138 = vector.shape_cast %135 : vector<1x16xf32> to vector<1x1x16xf32>
      tpu.vector_store %arg7[%c1_88, %c16_89, %c0_90], %138 {strides = array<i32>} : memref<2x22x16xf32, #tpu.memory_space<vmem>>, vector<1x1x16xf32>,
      %139 = vector.extract_strided_slice %25 {offsets = [0, 224], sizes = [1, 16], strides = [1, 1]} : vector<1x256xf32> to vector<1x16xf32>
      %c0_91 = arith.constant 0 : index
      %c17 = arith.constant 17 : index
      %c0_92 = arith.constant 0 : index
      %140 = vector.load %arg7[%c0_91, %c17, %c0_92] : memref<2x22x16xf32, #tpu.memory_space<vmem>>, vector<1x1x16xf32>
      %141 = vector.shape_cast %140 : vector<1x1x16xf32> to vector<1x16xf32>
      %142 = vector.shape_cast %139 : vector<1x16xf32> to vector<1x1x16xf32>
      tpu.vector_store %arg7[%c0_91, %c17, %c0_92], %142 {strides = array<i32>} : memref<2x22x16xf32, #tpu.memory_space<vmem>>, vector<1x1x16xf32>,
      %143 = vector.extract_strided_slice %26 {offsets = [0, 224], sizes = [1, 16], strides = [1, 1]} : vector<1x256xf32> to vector<1x16xf32>
      %c1_93 = arith.constant 1 : index
      %c17_94 = arith.constant 17 : index
      %c0_95 = arith.constant 0 : index
      %144 = vector.load %arg7[%c1_93, %c17_94, %c0_95] : memref<2x22x16xf32, #tpu.memory_space<vmem>>, vector<1x1x16xf32>
      %145 = vector.shape_cast %144 : vector<1x1x16xf32> to vector<1x16xf32>
      %146 = vector.shape_cast %143 : vector<1x16xf32> to vector<1x1x16xf32>
      tpu.vector_store %arg7[%c1_93, %c17_94, %c0_95], %146 {strides = array<i32>} : memref<2x22x16xf32, #tpu.memory_space<vmem>>, vector<1x1x16xf32>,
      %147 = vector.extract_strided_slice %25 {offsets = [0, 240], sizes = [1, 16], strides = [1, 1]} : vector<1x256xf32> to vector<1x16xf32>
      %c0_96 = arith.constant 0 : index
      %c18 = arith.constant 18 : index
      %c0_97 = arith.constant 0 : index
      %148 = vector.load %arg7[%c0_96, %c18, %c0_97] : memref<2x22x16xf32, #tpu.memory_space<vmem>>, vector<1x1x16xf32>
      %149 = vector.shape_cast %148 : vector<1x1x16xf32> to vector<1x16xf32>
      %150 = vector.shape_cast %147 : vector<1x16xf32> to vector<1x1x16xf32>
      tpu.vector_store %arg7[%c0_96, %c18, %c0_97], %150 {strides = array<i32>} : memref<2x22x16xf32, #tpu.memory_space<vmem>>, vector<1x1x16xf32>,
      %151 = vector.extract_strided_slice %26 {offsets = [0, 240], sizes = [1, 16], strides = [1, 1]} : vector<1x256xf32> to vector<1x16xf32>
      %c1_98 = arith.constant 1 : index
      %c18_99 = arith.constant 18 : index
      %c0_100 = arith.constant 0 : index
      %152 = vector.load %arg7[%c1_98, %c18_99, %c0_100] : memref<2x22x16xf32, #tpu.memory_space<vmem>>, vector<1x1x16xf32>
      %153 = vector.shape_cast %152 : vector<1x1x16xf32> to vector<1x16xf32>
      %154 = vector.shape_cast %151 : vector<1x16xf32> to vector<1x1x16xf32>
      tpu.vector_store %arg7[%c1_98, %c18_99, %c0_100], %154 {strides = array<i32>} : memref<2x22x16xf32, #tpu.memory_space<vmem>>, vector<1x1x16xf32>,
      %cst_101 = arith.constant 0.000000e+00 : f32
      %155 = vector.broadcast %cst_101 : f32 to vector<16x16xf32>
      %cst_102 = arith.constant 0.000000e+00 : f32
      %156 = vector.broadcast %cst_102 : f32 to vector<16x16xf32>
      %c0_103 = arith.constant 0 : index
      %c0_104 = arith.constant 0 : index
      %c0_105 = arith.constant 0 : index
      %157 = vector.load %arg7[%c0_103, %c0_104, %c0_105] : memref<2x22x16xf32, #tpu.memory_space<vmem>>, vector<1x16x16xf32>
      %158 = vector.shape_cast %157 : vector<1x16x16xf32> to vector<16x16xf32>
      %c0_106 = arith.constant 0 : index
      %c0_107 = arith.constant 0 : index
      %c0_108 = arith.constant 0 : index
      %c0_109 = arith.constant 0 : index
      %159 = vector.load %arg2[%c0_106, %c0_107, %c0_108, %c0_109] : memref<2x7x16x16xf32, #tpu.memory_space<vmem>>, vector<1x1x16x16xf32>
      %160 = vector.shape_cast %159 : vector<1x1x16x16xf32> to vector<16x16xf32>
      %cst_110 = arith.constant dense<0.000000e+00> : vector<16x16xf32>
      %161 = tpu.matmul %158, %160, %cst_110 {dimension_numbers = #tpu.dot_dimension_numbers<[1], [0], [0], [1], [0, 0, 1, 1], [], []>} : vector<16x16xf32>, vector<16x16xf32>, vector<16x16xf32> -> vector<16x16xf32>
      %162 = arith.addf %155, %161 : vector<16x16xf32>
      %c1_111 = arith.constant 1 : index
      %c0_112 = arith.constant 0 : index
      %c0_113 = arith.constant 0 : index
      %163 = vector.load %arg7[%c1_111, %c0_112, %c0_113] : memref<2x22x16xf32, #tpu.memory_space<vmem>>, vector<1x16x16xf32>
      %164 = vector.shape_cast %163 : vector<1x16x16xf32> to vector<16x16xf32>
      %c1_114 = arith.constant 1 : index
      %c0_115 = arith.constant 0 : index
      %c0_116 = arith.constant 0 : index
      %c0_117 = arith.constant 0 : index
      %165 = vector.load %arg2[%c1_114, %c0_115, %c0_116, %c0_117] : memref<2x7x16x16xf32, #tpu.memory_space<vmem>>, vector<1x1x16x16xf32>
      %166 = vector.shape_cast %165 : vector<1x1x16x16xf32> to vector<16x16xf32>
      %cst_118 = arith.constant dense<0.000000e+00> : vector<16x16xf32>
      %167 = tpu.matmul %164, %166, %cst_118 {dimension_numbers = #tpu.dot_dimension_numbers<[1], [0], [0], [1], [0, 0, 1, 1], [], []>} : vector<16x16xf32>, vector<16x16xf32>, vector<16x16xf32> -> vector<16x16xf32>
      %168 = arith.addf %156, %167 : vector<16x16xf32>
      %c0_119 = arith.constant 0 : index
      %c1_120 = arith.constant 1 : index
      %c0_121 = arith.constant 0 : index
      %169 = vector.load %arg7[%c0_119, %c1_120, %c0_121] : memref<2x22x16xf32, #tpu.memory_space<vmem>>, vector<1x16x16xf32>
      %170 = vector.shape_cast %169 : vector<1x16x16xf32> to vector<16x16xf32>
      %c0_122 = arith.constant 0 : index
      %c1_123 = arith.constant 1 : index
      %c0_124 = arith.constant 0 : index
      %c0_125 = arith.constant 0 : index
      %171 = vector.load %arg2[%c0_122, %c1_123, %c0_124, %c0_125] : memref<2x7x16x16xf32, #tpu.memory_space<vmem>>, vector<1x1x16x16xf32>
      %172 = vector.shape_cast %171 : vector<1x1x16x16xf32> to vector<16x16xf32>
      %cst_126 = arith.constant dense<0.000000e+00> : vector<16x16xf32>
      %173 = tpu.matmul %170, %172, %cst_126 {dimension_numbers = #tpu.dot_dimension_numbers<[1], [0], [0], [1], [0, 0, 1, 1], [], []>} : vector<16x16xf32>, vector<16x16xf32>, vector<16x16xf32> -> vector<16x16xf32>
      %174 = arith.addf %162, %173 : vector<16x16xf32>
      %c1_127 = arith.constant 1 : index
      %c1_128 = arith.constant 1 : index
      %c0_129 = arith.constant 0 : index
      %175 = vector.load %arg7[%c1_127, %c1_128, %c0_129] : memref<2x22x16xf32, #tpu.memory_space<vmem>>, vector<1x16x16xf32>
      %176 = vector.shape_cast %175 : vector<1x16x16xf32> to vector<16x16xf32>
      %c1_130 = arith.constant 1 : index
      %c1_131 = arith.constant 1 : index
      %c0_132 = arith.constant 0 : index
      %c0_133 = arith.constant 0 : index
      %177 = vector.load %arg2[%c1_130, %c1_131, %c0_132, %c0_133] : memref<2x7x16x16xf32, #tpu.memory_space<vmem>>, vector<1x1x16x16xf32>
      %178 = vector.shape_cast %177 : vector<1x1x16x16xf32> to vector<16x16xf32>
      %cst_134 = arith.constant dense<0.000000e+00> : vector<16x16xf32>
      %179 = tpu.matmul %176, %178, %cst_134 {dimension_numbers = #tpu.dot_dimension_numbers<[1], [0], [0], [1], [0, 0, 1, 1], [], []>} : vector<16x16xf32>, vector<16x16xf32>, vector<16x16xf32> -> vector<16x16xf32>
      %180 = arith.addf %168, %179 : vector<16x16xf32>
      %c0_135 = arith.constant 0 : index
      %c2 = arith.constant 2 : index
      %c0_136 = arith.constant 0 : index
      %181 = vector.load %arg7[%c0_135, %c2, %c0_136] : memref<2x22x16xf32, #tpu.memory_space<vmem>>, vector<1x16x16xf32>
      %182 = vector.shape_cast %181 : vector<1x16x16xf32> to vector<16x16xf32>
      %c0_137 = arith.constant 0 : index
      %c2_138 = arith.constant 2 : index
      %c0_139 = arith.constant 0 : index
      %c0_140 = arith.constant 0 : index
      %183 = vector.load %arg2[%c0_137, %c2_138, %c0_139, %c0_140] : memref<2x7x16x16xf32, #tpu.memory_space<vmem>>, vector<1x1x16x16xf32>
      %184 = vector.shape_cast %183 : vector<1x1x16x16xf32> to vector<16x16xf32>
      %cst_141 = arith.constant dense<0.000000e+00> : vector<16x16xf32>
      %185 = tpu.matmul %182, %184, %cst_141 {dimension_numbers = #tpu.dot_dimension_numbers<[1], [0], [0], [1], [0, 0, 1, 1], [], []>} : vector<16x16xf32>, vector<16x16xf32>, vector<16x16xf32> -> vector<16x16xf32>
      %186 = arith.addf %174, %185 : vector<16x16xf32>
      %c1_142 = arith.constant 1 : index
      %c2_143 = arith.constant 2 : index
      %c0_144 = arith.constant 0 : index
      %187 = vector.load %arg7[%c1_142, %c2_143, %c0_144] : memref<2x22x16xf32, #tpu.memory_space<vmem>>, vector<1x16x16xf32>
      %188 = vector.shape_cast %187 : vector<1x16x16xf32> to vector<16x16xf32>
      %c1_145 = arith.constant 1 : index
      %c2_146 = arith.constant 2 : index
      %c0_147 = arith.constant 0 : index
      %c0_148 = arith.constant 0 : index
      %189 = vector.load %arg2[%c1_145, %c2_146, %c0_147, %c0_148] : memref<2x7x16x16xf32, #tpu.memory_space<vmem>>, vector<1x1x16x16xf32>
      %190 = vector.shape_cast %189 : vector<1x1x16x16xf32> to vector<16x16xf32>
      %cst_149 = arith.constant dense<0.000000e+00> : vector<16x16xf32>
      %191 = tpu.matmul %188, %190, %cst_149 {dimension_numbers = #tpu.dot_dimension_numbers<[1], [0], [0], [1], [0, 0, 1, 1], [], []>} : vector<16x16xf32>, vector<16x16xf32>, vector<16x16xf32> -> vector<16x16xf32>
      %192 = arith.addf %180, %191 : vector<16x16xf32>
      %c0_150 = arith.constant 0 : index
      %c3_151 = arith.constant 3 : index
      %c0_152 = arith.constant 0 : index
      %193 = vector.load %arg7[%c0_150, %c3_151, %c0_152] : memref<2x22x16xf32, #tpu.memory_space<vmem>>, vector<1x16x16xf32>
      %194 = vector.shape_cast %193 : vector<1x16x16xf32> to vector<16x16xf32>
      %c0_153 = arith.constant 0 : index
      %c3_154 = arith.constant 3 : index
      %c0_155 = arith.constant 0 : index
      %c0_156 = arith.constant 0 : index
      %195 = vector.load %arg2[%c0_153, %c3_154, %c0_155, %c0_156] : memref<2x7x16x16xf32, #tpu.memory_space<vmem>>, vector<1x1x16x16xf32>
      %196 = vector.shape_cast %195 : vector<1x1x16x16xf32> to vector<16x16xf32>
      %cst_157 = arith.constant dense<0.000000e+00> : vector<16x16xf32>
      %197 = tpu.matmul %194, %196, %cst_157 {dimension_numbers = #tpu.dot_dimension_numbers<[1], [0], [0], [1], [0, 0, 1, 1], [], []>} : vector<16x16xf32>, vector<16x16xf32>, vector<16x16xf32> -> vector<16x16xf32>
      %198 = arith.addf %186, %197 : vector<16x16xf32>
      %c1_158 = arith.constant 1 : index
      %c3_159 = arith.constant 3 : index
      %c0_160 = arith.constant 0 : index
      %199 = vector.load %arg7[%c1_158, %c3_159, %c0_160] : memref<2x22x16xf32, #tpu.memory_space<vmem>>, vector<1x16x16xf32>
      %200 = vector.shape_cast %199 : vector<1x16x16xf32> to vector<16x16xf32>
      %c1_161 = arith.constant 1 : index
      %c3_162 = arith.constant 3 : index
      %c0_163 = arith.constant 0 : index
      %c0_164 = arith.constant 0 : index
      %201 = vector.load %arg2[%c1_161, %c3_162, %c0_163, %c0_164] : memref<2x7x16x16xf32, #tpu.memory_space<vmem>>, vector<1x1x16x16xf32>
      %202 = vector.shape_cast %201 : vector<1x1x16x16xf32> to vector<16x16xf32>
      %cst_165 = arith.constant dense<0.000000e+00> : vector<16x16xf32>
      %203 = tpu.matmul %200, %202, %cst_165 {dimension_numbers = #tpu.dot_dimension_numbers<[1], [0], [0], [1], [0, 0, 1, 1], [], []>} : vector<16x16xf32>, vector<16x16xf32>, vector<16x16xf32> -> vector<16x16xf32>
      %204 = arith.addf %192, %203 : vector<16x16xf32>
      %c0_166 = arith.constant 0 : index
      %c4_167 = arith.constant 4 : index
      %c0_168 = arith.constant 0 : index
      %205 = vector.load %arg7[%c0_166, %c4_167, %c0_168] : memref<2x22x16xf32, #tpu.memory_space<vmem>>, vector<1x16x16xf32>
      %206 = vector.shape_cast %205 : vector<1x16x16xf32> to vector<16x16xf32>
      %c0_169 = arith.constant 0 : index
      %c4_170 = arith.constant 4 : index
      %c0_171 = arith.constant 0 : index
      %c0_172 = arith.constant 0 : index
      %207 = vector.load %arg2[%c0_169, %c4_170, %c0_171, %c0_172] : memref<2x7x16x16xf32, #tpu.memory_space<vmem>>, vector<1x1x16x16xf32>
      %208 = vector.shape_cast %207 : vector<1x1x16x16xf32> to vector<16x16xf32>
      %cst_173 = arith.constant dense<0.000000e+00> : vector<16x16xf32>
      %209 = tpu.matmul %206, %208, %cst_173 {dimension_numbers = #tpu.dot_dimension_numbers<[1], [0], [0], [1], [0, 0, 1, 1], [], []>} : vector<16x16xf32>, vector<16x16xf32>, vector<16x16xf32> -> vector<16x16xf32>
      %210 = arith.addf %198, %209 : vector<16x16xf32>
      %c1_174 = arith.constant 1 : index
      %c4_175 = arith.constant 4 : index
      %c0_176 = arith.constant 0 : index
      %211 = vector.load %arg7[%c1_174, %c4_175, %c0_176] : memref<2x22x16xf32, #tpu.memory_space<vmem>>, vector<1x16x16xf32>
      %212 = vector.shape_cast %211 : vector<1x16x16xf32> to vector<16x16xf32>
      %c1_177 = arith.constant 1 : index
      %c4_178 = arith.constant 4 : index
      %c0_179 = arith.constant 0 : index
      %c0_180 = arith.constant 0 : index
      %213 = vector.load %arg2[%c1_177, %c4_178, %c0_179, %c0_180] : memref<2x7x16x16xf32, #tpu.memory_space<vmem>>, vector<1x1x16x16xf32>
      %214 = vector.shape_cast %213 : vector<1x1x16x16xf32> to vector<16x16xf32>
      %cst_181 = arith.constant dense<0.000000e+00> : vector<16x16xf32>
      %215 = tpu.matmul %212, %214, %cst_181 {dimension_numbers = #tpu.dot_dimension_numbers<[1], [0], [0], [1], [0, 0, 1, 1], [], []>} : vector<16x16xf32>, vector<16x16xf32>, vector<16x16xf32> -> vector<16x16xf32>
      %216 = arith.addf %204, %215 : vector<16x16xf32>
      %c0_182 = arith.constant 0 : index
      %c5_183 = arith.constant 5 : index
      %c0_184 = arith.constant 0 : index
      %217 = vector.load %arg7[%c0_182, %c5_183, %c0_184] : memref<2x22x16xf32, #tpu.memory_space<vmem>>, vector<1x16x16xf32>
      %218 = vector.shape_cast %217 : vector<1x16x16xf32> to vector<16x16xf32>
      %c0_185 = arith.constant 0 : index
      %c5_186 = arith.constant 5 : index
      %c0_187 = arith.constant 0 : index
      %c0_188 = arith.constant 0 : index
      %219 = vector.load %arg2[%c0_185, %c5_186, %c0_187, %c0_188] : memref<2x7x16x16xf32, #tpu.memory_space<vmem>>, vector<1x1x16x16xf32>
      %220 = vector.shape_cast %219 : vector<1x1x16x16xf32> to vector<16x16xf32>
      %cst_189 = arith.constant dense<0.000000e+00> : vector<16x16xf32>
      %221 = tpu.matmul %218, %220, %cst_189 {dimension_numbers = #tpu.dot_dimension_numbers<[1], [0], [0], [1], [0, 0, 1, 1], [], []>} : vector<16x16xf32>, vector<16x16xf32>, vector<16x16xf32> -> vector<16x16xf32>
      %222 = arith.addf %210, %221 : vector<16x16xf32>
      %c1_190 = arith.constant 1 : index
      %c5_191 = arith.constant 5 : index
      %c0_192 = arith.constant 0 : index
      %223 = vector.load %arg7[%c1_190, %c5_191, %c0_192] : memref<2x22x16xf32, #tpu.memory_space<vmem>>, vector<1x16x16xf32>
      %224 = vector.shape_cast %223 : vector<1x16x16xf32> to vector<16x16xf32>
      %c1_193 = arith.constant 1 : index
      %c5_194 = arith.constant 5 : index
      %c0_195 = arith.constant 0 : index
      %c0_196 = arith.constant 0 : index
      %225 = vector.load %arg2[%c1_193, %c5_194, %c0_195, %c0_196] : memref<2x7x16x16xf32, #tpu.memory_space<vmem>>, vector<1x1x16x16xf32>
      %226 = vector.shape_cast %225 : vector<1x1x16x16xf32> to vector<16x16xf32>
      %cst_197 = arith.constant dense<0.000000e+00> : vector<16x16xf32>
      %227 = tpu.matmul %224, %226, %cst_197 {dimension_numbers = #tpu.dot_dimension_numbers<[1], [0], [0], [1], [0, 0, 1, 1], [], []>} : vector<16x16xf32>, vector<16x16xf32>, vector<16x16xf32> -> vector<16x16xf32>
      %228 = arith.addf %216, %227 : vector<16x16xf32>
      %c0_198 = arith.constant 0 : index
      %c6_199 = arith.constant 6 : index
      %c0_200 = arith.constant 0 : index
      %229 = vector.load %arg7[%c0_198, %c6_199, %c0_200] : memref<2x22x16xf32, #tpu.memory_space<vmem>>, vector<1x16x16xf32>
      %230 = vector.shape_cast %229 : vector<1x16x16xf32> to vector<16x16xf32>
      %c0_201 = arith.constant 0 : index
      %c6_202 = arith.constant 6 : index
      %c0_203 = arith.constant 0 : index
      %c0_204 = arith.constant 0 : index
      %231 = vector.load %arg2[%c0_201, %c6_202, %c0_203, %c0_204] : memref<2x7x16x16xf32, #tpu.memory_space<vmem>>, vector<1x1x16x16xf32>
      %232 = vector.shape_cast %231 : vector<1x1x16x16xf32> to vector<16x16xf32>
      %cst_205 = arith.constant dense<0.000000e+00> : vector<16x16xf32>
      %233 = tpu.matmul %230, %232, %cst_205 {dimension_numbers = #tpu.dot_dimension_numbers<[1], [0], [0], [1], [0, 0, 1, 1], [], []>} : vector<16x16xf32>, vector<16x16xf32>, vector<16x16xf32> -> vector<16x16xf32>
      %234 = arith.addf %222, %233 : vector<16x16xf32>
      %c1_206 = arith.constant 1 : index
      %c6_207 = arith.constant 6 : index
      %c0_208 = arith.constant 0 : index
      %235 = vector.load %arg7[%c1_206, %c6_207, %c0_208] : memref<2x22x16xf32, #tpu.memory_space<vmem>>, vector<1x16x16xf32>
      %236 = vector.shape_cast %235 : vector<1x16x16xf32> to vector<16x16xf32>
      %c1_209 = arith.constant 1 : index
      %c6_210 = arith.constant 6 : index
      %c0_211 = arith.constant 0 : index
      %c0_212 = arith.constant 0 : index
      %237 = vector.load %arg2[%c1_209, %c6_210, %c0_211, %c0_212] : memref<2x7x16x16xf32, #tpu.memory_space<vmem>>, vector<1x1x16x16xf32>
      %238 = vector.shape_cast %237 : vector<1x1x16x16xf32> to vector<16x16xf32>
      %cst_213 = arith.constant dense<0.000000e+00> : vector<16x16xf32>
      %239 = tpu.matmul %236, %238, %cst_213 {dimension_numbers = #tpu.dot_dimension_numbers<[1], [0], [0], [1], [0, 0, 1, 1], [], []>} : vector<16x16xf32>, vector<16x16xf32>, vector<16x16xf32> -> vector<16x16xf32>
      %240 = arith.addf %228, %239 : vector<16x16xf32>
      %241 = arith.addf %234, %240 : vector<16x16xf32>
      %242 = arith.negf %241 : vector<16x16xf32>
      %243 = math.exp %242 : vector<16x16xf32>
      %cst_214 = arith.constant 1.000000e+00 : f32
      %244 = vector.broadcast %cst_214 : f32 to vector<16x16xf32>
      %245 = arith.addf %244, %243 : vector<16x16xf32>
      %246 = arith.divf %244, %245 : vector<16x16xf32>
      %c0_215 = arith.constant 0 : index
      %c0_216 = arith.constant 0 : index
      %c0_217 = arith.constant 0 : index
      %247 = vector.load %arg4[%c0_215, %c0_216, %c0_217] : memref<1x16x16xf32, #tpu.memory_space<vmem>>, vector<1x16x16xf32>
      %248 = vector.shape_cast %247 : vector<1x16x16xf32> to vector<16x16xf32>
      %249 = vector.shape_cast %246 : vector<16x16xf32> to vector<1x16x16xf32>
      tpu.vector_store %arg4[%c0_215, %c0_216, %c0_217], %249 {strides = array<i32>} : memref<1x16x16xf32, #tpu.memory_space<vmem>>, vector<1x16x16xf32>,
    } else {
    }
    return
  }
  func.func @transform_0(%arg0: i32, %arg1: i32) -> (i32, i32, i32, i32) {
    %c0_i32 = arith.constant 0 : i32
    %c0_i32_0 = arith.constant 0 : i32
    %c0_i32_1 = arith.constant 0 : i32
    %c0_i32_2 = arith.constant 0 : i32
    %c0_i32_3 = arith.constant 0 : i32
    return %c0_i32, %c0_i32_0, %c0_i32_1, %c0_i32_2 : i32, i32, i32, i32
  }
  func.func @transform_1(%arg0: i32, %arg1: i32) -> (i32, i32, i32) {
    %c0_i32 = arith.constant 0 : i32
    %c0_i32_0 = arith.constant 0 : i32
    return %arg0, %arg1, %c0_i32 : i32, i32, i32
  }
  func.func @transform_2(%arg0: i32, %arg1: i32) -> (i32, i32, i32) {
    %c0_i32 = arith.constant 0 : i32
    %c0_i32_0 = arith.constant 0 : i32
    %c0_i32_1 = arith.constant 0 : i32
    return %arg0, %c0_i32, %c0_i32_0 : i32, i32, i32
  }
}

</mosaic_0001>

<llo_original>
// kernel: tpu_custom_call.1
$region0: #{tpu_custom_call.1}
  #allocation0 [shape = 'u32[]', space=smem, size = 0x4, offset = 0x4, fixed_abs, tag = 'smem constant byte address 0x4 - core index']
  #allocation1 [shape = 'u32[144,128]{1,0:T(1,128)}', space=vmem, size = 0x12000, scoped, tag = 'internal scratch']
  #allocation2 [shape = 'f32[1,256]{1,0:T(1,128)}', space=vmem, size = 0x400, scoped, tag = 'scratch operand']
  #allocation3 [shape = 'f32[1,256]{1,0:T(1,128)}', space=vmem, size = 0x400, scoped, tag = 'scratch operand']
  #allocation4 [shape = 'f32[2,22,16]{2,1,0:T(8,128)}', space=vmem, size = 0x6000, scoped, tag = 'scratch operand']
  %s0 = inlined_call_operand.hbm [shape: f32[2,7,16,16], index: 0, kind: input, shape index: {}]
  %s1 = inlined_call_operand.hbm [shape: f32[2,4,256], index: 1, kind: input, shape index: {}]
  %s2 = inlined_call_operand.hbm [shape: f32[2,16,16], index: 2, kind: output, shape index: {}]
  %s3 = sld [smem:[#allocation0]]
  $region61: #{tpu_custom_call.1} parent=0
    _
  %s5 = ssub.s32 1, %s3
  %s6 = scalar_select 0, %s5, %s3
  $region1: #{tpu_custom_call.1} parent=0
    #allocation5 [shape = 'u8[114688]{0}', space=vmem, size = 0x1c000, scoped, tag = 'input window, operand 0, single buffered']
    #allocation6 [shape = 's32[2]{0}', space=sflag, size = 0x8, scoped, tag = 'scoped memory for tpu_custom_call.1']
    #allocation7 [shape = 's32[2]{0}', space=sflag, size = 0x8, scoped, tag = 'scoped memory for tpu_custom_call.1']
    #allocation8 [shape = 'u8[8192]{0}', space=vmem, size = 0x2000, scoped, tag = 'input window, operand 1']
    #allocation9 [shape = 's32[2]{0}', space=sflag, size = 0x8, scoped, tag = 'scoped memory for tpu_custom_call.1']
    #allocation10 [shape = 'u8[16384]{0}', space=vmem, size = 0x4000, scoped, tag = 'output window, operand 0']
    %7 = vsyncpa [#allocation6], 0
    %8 = vsyncpa [#allocation9], 0
    %s9 = scalar_lea.sflag [#allocation9], 1
    %10 = vsyncpa %s9, 0
    %11 = vsyncpa [#allocation7], 0
    %s12 = scalar_lea.sflag [#allocation7], 1
    %13 = vsyncpa %s12, 0
    loop: start=0, step=1, limit=4
    $region2: #{tpu_custom_call.1} parent=1 // loop_pre_header
      _
    $region3: #{tpu_custom_call.1} parent=1 // loop_header
      %s15 = sphi 0, %s19
      %p16 = scmp.ge.s32.totalorder %s15, 4
      %s22 = sphi 0, %s34
      %s23 = sphi 0, %s30
      %s24 = sphi 0, %s22
      %s25 = sphi 0, %s23
      %s26 = sphi 0, %s24
      %s27 = sphi 0, %s25
      %s35 = sphi 0, %s35
      %s37 = sphi 0, %s35
      %s38 = sphi 0, %s37
      %s52 = sphi 0, %s38
      %s60 = sphi 0, %s62
      %s63 = sphi 0, %s60
      %s64 = sphi 0, %s63
      %s80 = sphi 0, %s64
      %s86 = sphi 0, %s88
      %s89 = sphi 0, %s86
      %s90 = sphi 0, %s89
      %s106 = sphi 0, %s90
    $region4: #{tpu_custom_call.1} parent=1 // loop_header_branch
      %18 = sbr.rel (%p16) target = $region8
    $region5: #{tpu_custom_call.1} parent=1 // loop_body
      %s20 = ssub.s32 %s15, 1
      %s21 = ssub.s32 %s15, 2
      %s28 = sadd.s32 1, %s23
      %p29 = scmp.ge.s32.totalorder %s28, 1
      %s30 = scalar_select %p29, 0, %s28
      %s31 = sadd.s32 1, %s22
      %s32 = scalar_select %p29, %s31, %s22
      %p33 = scmp.ge.s32.totalorder %s32, 2
      %s34 = scalar_select %p33, 0, %s32
      %s36 = sadd.s32 %s35, 1
      %p39 = scmp.eq.s32.totalorder %s15, 1
      %p40 = scmp.ne.s32.totalorder %s35, %s37
      %p41 = scmp.eq.s32.totalorder %s15, 0
      %p42 = por %p40, %p41
      %p43 = scmp.ne.s32.totalorder %s35, %s37
      %p44 = scmp.eq.s32.totalorder %s20, 1
      %p45 = por %p43, %p44
      %p46 = scmp.ne.s32.totalorder %s37, %s38
      %p47 = scmp.eq.s32.totalorder %s20, 0
      %p48 = por %p46, %p47
      %p49 = scmp.ne.s32.totalorder %s37, %s38
      %p50 = scmp.eq.s32.totalorder %s21, 1
      %p51 = por %p49, %p50
      %p53 = scmp.ne.s32.totalorder %s38, %s52
      %p54 = scmp.eq.s32.totalorder %s21, 0
      %p55 = por %p53, %p54
      %s56 = ssub.s32 %s22, %s34
      %s57 = ssub.s32 %s23, %s30
      %s58 = sor.u32 %s56, %s57
      %p59 = scmp.eq.s32.totalorder %s58, 0
      %s61 = sadd.s32 %s60, 1
      %s62 = scalar_select %p59, %s60, %s61
      %p65 = pneg %p59
      %p66 = scmp.eq.s32.totalorder %s15, 1
      %p67 = por %p65, %p66
      %p68 = scmp.ne.s32.totalorder %s60, %s63
      %p69 = scmp.eq.s32.totalorder %s15, 0
      %p70 = por %p68, %p69
      %p71 = scmp.ne.s32.totalorder %s60, %s63
      %p72 = scmp.eq.s32.totalorder %s20, 1
      %p73 = por %p71, %p72
      %p74 = scmp.ne.s32.totalorder %s63, %s64
      %p75 = scmp.eq.s32.totalorder %s20, 0
      %p76 = por %p74, %p75
      %p77 = scmp.ne.s32.totalorder %s63, %s64
      %p78 = scmp.eq.s32.totalorder %s21, 1
      %p79 = por %p77, %p78
      %p81 = scmp.ne.s32.totalorder %s64, %s80
      %p82 = scmp.eq.s32.totalorder %s21, 0
      %p83 = por %p81, %p82
      %s84 = ssub.s32 %s22, %s34
      %p85 = scmp.eq.s32.totalorder %s84, 0
      %s87 = sadd.s32 %s86, 1
      %s88 = scalar_select %p85, %s86, %s87
      %p91 = pneg %p85
      %p92 = scmp.eq.s32.totalorder %s15, 1
      %p93 = por %p91, %p92
      %p94 = scmp.ne.s32.totalorder %s86, %s89
      %p95 = scmp.eq.s32.totalorder %s15, 0
      %p96 = por %p94, %p95
      %p97 = scmp.ne.s32.totalorder %s86, %s89
      %p98 = scmp.eq.s32.totalorder %s20, 1
      %p99 = por %p97, %p98
      %p100 = scmp.ne.s32.totalorder %s89, %s90
      %p101 = scmp.eq.s32.totalorder %s20, 0
      %p102 = por %p100, %p101
      %p103 = scmp.ne.s32.totalorder %s89, %s90
      %p104 = scmp.eq.s32.totalorder %s21, 1
      %p105 = por %p103, %p104
      %p107 = scmp.ne.s32.totalorder %s90, %s106
      %p108 = scmp.eq.s32.totalorder %s21, 0
      %p109 = por %p107, %p108
      %p110 = scmp.le.s32.totalorder 1, %s15
      %p111 = scmp.lt.s32.totalorder %s15, 3
      %p112 = pnand %p110, %p111
      %p113 = pneg %p112
      // Predicated region
      $region9: #{tpu_custom_call.1} parent=5 // pred_check
        _
      $region10: #{tpu_custom_call.1} parent=5 // pred_check_branch
        %115 = sbr.rel (%p112) target = $region12
      $region11: #{tpu_custom_call.1} parent=5 // pred_region
        %s116 = ssub.s32 %s15, 1
        // Predicated region
        $region13: #{tpu_custom_call.1} parent=11 // pred_check
          %p117 = pneg %p48
        $region14: #{tpu_custom_call.1} parent=11 // pred_check_branch
          %119 = sbr.rel (%p117) target = $region16
        $region15: #{tpu_custom_call.1} parent=11 // pred_region
          %s121 = ssub.s32 3584, 3584
          %122 = vsyncadd [#allocation6], %s121
          %s123 = sshll.u32 [#allocation5], 4
          %s124 = int_to_ptr.vmem [resolvable:$true] %s123
          %129 = dma.hbm_to_vmem [thread:$0]  %s0, 3584, %s124, [#allocation6], 128, 128, 8
        $region16: #{tpu_custom_call.1} parent=11 // pred_fallthru
          _
      $region12: #{tpu_custom_call.1} parent=5 // pred_fallthru
        _
      %p130 = scmp.lt.s32.totalorder %s15, 2
      // Predicated region
      $region17: #{tpu_custom_call.1} parent=5 // pred_check
        %p131 = pneg %p130
      $region18: #{tpu_custom_call.1} parent=5 // pred_check_branch
        %133 = sbr.rel (%p131) target = $region20
      $region19: #{tpu_custom_call.1} parent=5 // pred_region
        // Predicated region
        $region21: #{tpu_custom_call.1} parent=19 // pred_check
          %p134 = pneg %p70
        $region22: #{tpu_custom_call.1} parent=19 // pred_check_branch
          %136 = sbr.rel (%p134) target = $region24
        $region23: #{tpu_custom_call.1} parent=19 // pred_region
          %s137 = sand.u32 %s60, 1
          %s138 = scalar_lea.sflag [#allocation9], %s137
          %s139 = sand.u32 %s60, 1
          %s140 = smul.addr %s139, 8
          %s141 = scalar_lea.vmem [#allocation8], %s140
          %s143 = ssub.s32 128, 128
          %144 = vsyncadd %s138, %s143
          %s145 = smul.addr %s23, 2
          %s146 = smul.addr %s22, 2
          %s147 = sadd.s32 %s145, %s146
          %s148 = smul.addr %s147, 64
          %s149 = scalar_lea.hbm %s1, %s148
          %s151 = sshll.u32 %s141, 4
          %s152 = int_to_ptr.vmem [resolvable:$true] %s151
          %154 = dma.hbm_to_vmem [thread:$0]  %s149, 128, %s152, %s138
        $region24: #{tpu_custom_call.1} parent=19 // pred_fallthru
          _
      $region20: #{tpu_custom_call.1} parent=5 // pred_fallthru
        _
      %p155 = scmp.le.s32.totalorder 1, %s15
      %p156 = scmp.lt.s32.totalorder %s15, 3
      %p157 = pnand %p155, %p156
      %p158 = pneg %p157
      // Predicated region
      $region25: #{tpu_custom_call.1} parent=5 // pred_check
        _
      $region26: #{tpu_custom_call.1} parent=5 // pred_check_branch
        %160 = sbr.rel (%p157) target = $region28
      $region27: #{tpu_custom_call.1} parent=5 // pred_region
        %s161 = ssub.s32 %s15, 1
        // Predicated region
        $region29: #{tpu_custom_call.1} parent=27 // pred_check
          %p162 = pneg %p48
        $region30: #{tpu_custom_call.1} parent=27 // pred_check_branch
          %164 = sbr.rel (%p162) target = $region32
        $region31: #{tpu_custom_call.1} parent=27 // pred_region
          %165 = dma.done [#allocation6], 3584
        $region32: #{tpu_custom_call.1} parent=27 // pred_fallthru
          _
        %s166 = sand.u32 %s63, 1
        %s167 = scalar_lea.sflag [#allocation9], %s166
        %s168 = sand.u32 %s63, 1
        %s169 = smul.addr %s168, 8
        %s170 = scalar_lea.vmem [#allocation8], %s169
        // Predicated region
        $region33: #{tpu_custom_call.1} parent=27 // pred_check
          %p171 = pneg %p76
        $region34: #{tpu_custom_call.1} parent=27 // pred_check_branch
          %173 = sbr.rel (%p171) target = $region36
        $region35: #{tpu_custom_call.1} parent=27 // pred_region
          %174 = dma.done %s167, 128
        $region36: #{tpu_custom_call.1} parent=27 // pred_fallthru
          _
        %p175 = pneg %p48
        %p176 = pneg %p45
        %s177 = sand.u32 %s63, 1
        %s178 = scalar_lea.sflag [#allocation9], %s177
        %s179 = sand.u32 %s63, 1
        %s180 = smul.addr %s179, 8
        %s181 = scalar_lea.vmem [#allocation8], %s180
        %p182 = pneg %p76
        %p183 = pneg %p73
        %p184 = pneg %p102
        %p185 = pneg %p99
        %s186 = sand.u32 %s89, 1
        %s187 = scalar_lea.sflag [#allocation7], %s186
        %s188 = sand.u32 %s89, 1
        %s189 = smul.addr %s188, 16
        %s190 = scalar_lea.vmem [#allocation10], %s189
        %p191 = scmp.eq.s32.totalorder %s24, 0
        %p192 = scmp.eq.s32.totalorder %s25, 0
        %p193 = pnand %p191, %p192
        %p194 = pneg %p193
        // Predicated region
        $region37: #{tpu_custom_call.1} parent=27 // pred_check
          _
        $region38: #{tpu_custom_call.1} parent=27 // pred_check_branch
          %196 = sbr.rel (%p193) target = $region40
        $region39: #{tpu_custom_call.1} parent=27 // pred_region
          %vm197 = vcmask 124928
          %198 = vst.msk [vmem:[#allocation4] sm:$0x7] %vm197, 0.0
          %199 = vst.msk [vmem:[#allocation4 + $0x18] sm:$0x7] %vm197, 0.0
          %200 = vst.msk [vmem:[#allocation4 + $0x13] sm:$0x7] %vm197, 0.0
          %201 = vst.msk [vmem:[#allocation4 + $0x2b] sm:$0x7] %vm197, 0.0
        $region40: #{tpu_custom_call.1} parent=27 // pred_fallthru
          _
        // Predicated region
        $region41: #{tpu_custom_call.1} parent=27 // pred_check
          %p202 = pneg %p192
        $region42: #{tpu_custom_call.1} parent=27 // pred_check_branch
          %204 = sbr.rel (%p202) target = $region44
        $region43: #{tpu_custom_call.1} parent=27 // pred_region
          %v205 = vlaneseq
          %vm206 = vcmp.ge.s32.totalorder %v205, 0
          %vm207 = vcmp.lt.s32.totalorder %v205, 256
          %vm208 = vmand %vm206, %vm207
          %209 = vst.msk [vmem:[#allocation2] sm:$0x3] %vm208, 0.0
          %210 = vst.msk [vmem:[#allocation3] sm:$0x3] %vm208, -inf
        $region44: #{tpu_custom_call.1} parent=27 // pred_fallthru
          _
        %v211 = vld [vmem:[%s170] sm:$0xff]
        %v212 = vld [vmem:[#allocation2] sm:$0x3]
        %v214 = vcombine.high %v211, %v211
        %vm216 = vcmask 1043456
        %v217 = vsel %vm216, %v211, 0.0
        %v218 = vrot.slane %v217, 4
        %v219 = vadd.f32 %v217, %v218
        %v220 = vrot.slane %v219, 2
        %v221 = vadd.f32 %v219, %v220
        %v222 = vrot.slane %v221, 1
        %v223 = vadd.f32 %v221, %v222
        %v224 = vsel %vm216, %v214, 0.0
        %v225 = vrot.slane %v224, 4
        %v226 = vadd.f32 %v224, %v225
        %v227 = vrot.slane %v226, 2
        %v228 = vadd.f32 %v226, %v227
        %v229 = vrot.slane %v228, 1
        %v230 = vadd.f32 %v228, %v229
        %v233 = vcombine.low %v223, %v230
        %v235 = vunpack.c.l.s4 1966171168
        %v236 = vunpack.c.0.s8 %v235
        %v237 = vlaneseq
        %v238 = vshrl.u32 %v237, 7
        %v239 = vsub.s32 %v236, %v238
        %v240 = vrot.slane %v233, %v239
        %v242 = vunpack.c.l.s4 1966171168
        %v243 = vunpack.c.0.s8 %v242
        %v244 = vlaneseq
        %v245 = vshrl.u32 %v244, 7
        %v246 = vsub.s32 %v243, %v245
        %v247 = vrot.slane %v240, %v246
        %v249 = vadd.f32 %v212, %v247
        %v250 = vlaneseq
        %vm251 = vcmp.ge.s32.totalorder %v250, 0
        %vm252 = vcmp.lt.s32.totalorder %v250, 256
        %vm253 = vmand %vm251, %vm252
        %254 = vst.msk [vmem:[#allocation2] sm:$0x3] %vm253, %v249
        %v255 = vld [vmem:[#allocation3] sm:$0x3]
        %v256 = vsel %vm216, %v211, -inf
        %v257 = vrot.slane %v256, 4
        %v258 = vmax.f32 %v256, %v257
        %v259 = vrot.slane %v258, 2
        %v260 = vmax.f32 %v258, %v259
        %v261 = vrot.slane %v260, 1
        %v262 = vmax.f32 %v260, %v261
        %v263 = vsel %vm216, %v214, -inf
        %v264 = vrot.slane %v263, 4
        %v265 = vmax.f32 %v263, %v264
        %v266 = vrot.slane %v265, 2
        %v267 = vmax.f32 %v265, %v266
        %v268 = vrot.slane %v267, 1
        %v269 = vmax.f32 %v267, %v268
        %v272 = vcombine.low %v262, %v269
        %v274 = vunpack.c.l.s4 1966171168
        %v275 = vunpack.c.0.s8 %v274
        %v276 = vlaneseq
        %v277 = vshrl.u32 %v276, 7
        %v278 = vsub.s32 %v275, %v277
        %v279 = vrot.slane %v272, %v278
        %v281 = vunpack.c.l.s4 1966171168
        %v282 = vunpack.c.0.s8 %v281
        %v283 = vlaneseq
        %v284 = vshrl.u32 %v283, 7
        %v285 = vsub.s32 %v282, %v284
        %v286 = vrot.slane %v279, %v285
        %v288 = vmax.f32 %v255, %v286
        %289 = vst.msk [vmem:[#allocation3] sm:$0x3] %vm253, %v288
        // Predicated region
        $region45: #{tpu_custom_call.1} parent=27 // pred_check
          %p290 = pneg %p192
        $region46: #{tpu_custom_call.1} parent=27 // pred_check_branch
          %292 = sbr.rel (%p290) target = $region48
        $region47: #{tpu_custom_call.1} parent=27 // pred_region
          %v293 = vld [vmem:[#allocation2] sm:$0x3]
          %v294 = vmul.f32 %v293, 0.25
          %v295 = vld [vmem:[#allocation3] sm:$0x3]
          %vm296 = vcmask 122880
          %297 = vst.msk [vmem:[#allocation4 + $0x3] sm:$0x1] %vm296, %v294
          %s298 = scalar_lea.vmem [#allocation4], 24
          %299 = vst.msk [vmem:[%s298 + $0x3] sm:$0x1] %vm296, %v295
          %v301 = vlaneseq
          %v302 = vshrl.u32 %v301, 7
          %v303 = vsub.s32 0, %v302
          %v304 = vrot.slane %v294, %v303
          %305 = vrot.lane.b32.xlu0 %v304, 112
          %v306 = vpop.permute.xlu0 %305
          %308 = vst.msk [vmem:[#allocation4 + $0x4] sm:$0x1] %vm296, %v306
          %v310 = vlaneseq
          %v311 = vshrl.u32 %v310, 7
          %v312 = vsub.s32 0, %v311
          %v313 = vrot.slane %v295, %v312
          %314 = vrot.lane.b32.xlu0 %v313, 112
          %v315 = vpop.permute.xlu0 %314
          %317 = vst.msk [vmem:[%s298 + $0x4] sm:$0x1] %vm296, %v315
          %318 = vrot.lane.b32.xlu0 %v304, 96
          %v319 = vpop.permute.xlu0 %318
          %321 = vst.msk [vmem:[#allocation4 + $0x5] sm:$0x1] %vm296, %v319
          %322 = vrot.lane.b32.xlu0 %v313, 96
          %v323 = vpop.permute.xlu0 %322
          %325 = vst.msk [vmem:[%s298 + $0x5] sm:$0x1] %vm296, %v323
          %326 = vrot.lane.b32.xlu0 %v304, 80
          %v327 = vpop.permute.xlu0 %326
          %329 = vst.msk [vmem:[#allocation4 + $0x6] sm:$0x1] %vm296, %v327
          %330 = vrot.lane.b32.xlu0 %v313, 80
          %v331 = vpop.permute.xlu0 %330
          %333 = vst.msk [vmem:[%s298 + $0x6] sm:$0x1] %vm296, %v331
          %334 = vrot.lane.b32.xlu0 %v304, 64
          %v335 = vpop.permute.xlu0 %334
          %337 = vst.msk [vmem:[#allocation4 + $0x7] sm:$0x1] %vm296, %v335
          %338 = vrot.lane.b32.xlu0 %v313, 64
          %v339 = vpop.permute.xlu0 %338
          %341 = vst.msk [vmem:[%s298 + $0x7] sm:$0x1] %vm296, %v339
          %342 = vrot.lane.b32.xlu0 %v304, 48
          %v343 = vpop.permute.xlu0 %342
          %345 = vst.msk [vmem:[#allocation4 + $0x8] sm:$0x1] %vm296, %v343
          %346 = vrot.lane.b32.xlu0 %v313, 48
          %v347 = vpop.permute.xlu0 %346
          %349 = vst.msk [vmem:[%s298 + $0x8] sm:$0x1] %vm296, %v347
          %350 = vrot.lane.b32.xlu0 %v304, 32
          %v351 = vpop.permute.xlu0 %350
          %353 = vst.msk [vmem:[#allocation4 + $0x9] sm:$0x1] %vm296, %v351
          %354 = vrot.lane.b32.xlu0 %v313, 32
          %v355 = vpop.permute.xlu0 %354
          %357 = vst.msk [vmem:[%s298 + $0x9] sm:$0x1] %vm296, %v355
          %358 = vrot.lane.b32.xlu0 %v304, 16
          %v359 = vpop.permute.xlu0 %358
          %361 = vst.msk [vmem:[#allocation4 + $0xa] sm:$0x1] %vm296, %v359
          %362 = vrot.lane.b32.xlu0 %v313, 16
          %v363 = vpop.permute.xlu0 %362
          %365 = vst.msk [vmem:[%s298 + $0xa] sm:$0x1] %vm296, %v363
          %v366 = vrot.slane %v294, 1
          %368 = vst.msk [vmem:[#allocation4 + $0xb] sm:$0x1] %vm296, %v366
          %v369 = vrot.slane %v295, 1
          %371 = vst.msk [vmem:[%s298 + $0xb] sm:$0x1] %vm296, %v369
          %372 = vrot.lane.b32.xlu0 %v294, 112
          %v373 = vpop.permute.xlu0 %372
          %v374 = vrot.slane %v373, 1
          %376 = vst.msk [vmem:[#allocation4 + $0xc] sm:$0x1] %vm296, %v374
          %377 = vrot.lane.b32.xlu0 %v295, 112
          %v378 = vpop.permute.xlu0 %377
          %v379 = vrot.slane %v378, 1
          %381 = vst.msk [vmem:[%s298 + $0xc] sm:$0x1] %vm296, %v379
          %382 = vrot.lane.b32.xlu0 %v294, 96
          %v383 = vpop.permute.xlu0 %382
          %v384 = vrot.slane %v383, 1
          %386 = vst.msk [vmem:[#allocation4 + $0xd] sm:$0x1] %vm296, %v384
          %387 = vrot.lane.b32.xlu0 %v295, 96
          %v388 = vpop.permute.xlu0 %387
          %v389 = vrot.slane %v388, 1
          %391 = vst.msk [vmem:[%s298 + $0xd] sm:$0x1] %vm296, %v389
          %392 = vrot.lane.b32.xlu0 %v294, 80
          %v393 = vpop.permute.xlu0 %392
          %v394 = vrot.slane %v393, 1
          %396 = vst.msk [vmem:[#allocation4 + $0xe] sm:$0x1] %vm296, %v394
          %397 = vrot.lane.b32.xlu0 %v295, 80
          %v398 = vpop.permute.xlu0 %397
          %v399 = vrot.slane %v398, 1
          %401 = vst.msk [vmem:[%s298 + $0xe] sm:$0x1] %vm296, %v399
          %402 = vrot.lane.b32.xlu0 %v294, 64
          %v403 = vpop.permute.xlu0 %402
          %v404 = vrot.slane %v403, 1
          %406 = vst.msk [vmem:[#allocation4 + $0xf] sm:$0x1] %vm296, %v404
          %407 = vrot.lane.b32.xlu0 %v295, 64
          %v408 = vpop.permute.xlu0 %407
          %v409 = vrot.slane %v408, 1
          %411 = vst.msk [vmem:[%s298 + $0xf] sm:$0x1] %vm296, %v409
          %412 = vrot.lane.b32.xlu0 %v294, 48
          %v413 = vpop.permute.xlu0 %412
          %v414 = vrot.slane %v413, 1
          %416 = vst.msk [vmem:[#allocation4 + $0x10] sm:$0x1] %vm296, %v414
          %417 = vrot.lane.b32.xlu0 %v295, 48
          %v418 = vpop.permute.xlu0 %417
          %v419 = vrot.slane %v418, 1
          %421 = vst.msk [vmem:[%s298 + $0x10] sm:$0x1] %vm296, %v419
          %422 = vrot.lane.b32.xlu0 %v294, 32
          %v423 = vpop.permute.xlu0 %422
          %v424 = vrot.slane %v423, 1
          %426 = vst.msk [vmem:[#allocation4 + $0x11] sm:$0x1] %vm296, %v424
          %427 = vrot.lane.b32.xlu0 %v295, 32
          %v428 = vpop.permute.xlu0 %427
          %v429 = vrot.slane %v428, 1
          %431 = vst.msk [vmem:[%s298 + $0x11] sm:$0x1] %vm296, %v429
          %432 = vrot.lane.b32.xlu0 %v294, 16
          %v433 = vpop.permute.xlu0 %432
          %v434 = vrot.slane %v433, 1
          %436 = vst.msk [vmem:[#allocation4 + $0x12] sm:$0x1] %vm296, %v434
          %437 = vrot.lane.b32.xlu0 %v295, 16
          %v438 = vpop.permute.xlu0 %437
          %v439 = vrot.slane %v438, 1
          %441 = vst.msk [vmem:[%s298 + $0x12] sm:$0x1] %vm296, %v439
          %v442 = vld [vmem:[#allocation4] sm:$0xff]
          %v443 = vld [vmem:[#allocation4 + $0x8] sm:$0xff]
          %v444 = vld [vmem:[#allocation5] sm:$0xff]
          %v445 = vld [vmem:[#allocation5 + $0x8] sm:$0xff]
          %v446 = vld [vmem:[%s298] sm:$0xff]
          %v447 = vld [vmem:[%s298 + $0x8] sm:$0xff]
          %s448 = scalar_lea.vmem [#allocation5], 112
          %v449 = vld [vmem:[%s448] sm:$0xff]
          %v450 = vld [vmem:[%s448 + $0x8] sm:$0xff]
          %v451 = vld [vmem:[#allocation4 + $0x1] sm:$0xff]
          %v452 = vld [vmem:[#allocation4 + $0x9] sm:$0xff]
          %s453 = scalar_lea.vmem [#allocation5], 16
          %v454 = vld [vmem:[%s453] sm:$0xff]
          %v455 = vld [vmem:[%s453 + $0x8] sm:$0xff]
          %vm456 = vcmask 130048
          %v458 = vsel %vm456, %v451, 0
          %v461 = vsel %vm456, %v452, 0
          %463 = vmatprep.subr.mxu0 0.0
          %464 = vmatpush1.msra.mxu0 %v454
          %465 = vmatprep.subr.mxu0 0.0
          %466 = vmatpush1.msra.mxu0 %v455
          %467 = vmatprep.subr.mxu0 0.0
          %468 = vmatpush1.msra.mxu0 0.0
          %469 = vmatprep.subr.mxu0 0.0
          %470 = vmatpush1.msra.mxu0 0.0
          %471 = vmatprep.subr.mxu0 0.0
          %472 = vmatpush1.msra.mxu0 0.0
          %473 = vmatprep.subr.mxu0 0.0
          %474 = vmatpush1.msra.mxu0 0.0
          %475 = vmatprep.subr.mxu0 0.0
          %476 = vmatpush1.msra.mxu0 0.0
          %477 = vmatprep.subr.mxu0 0.0
          %478 = vmatpush1.msra.mxu0 0.0
          %479 = vmatprep.subr.mxu0 0.0
          %480 = vmatpush1.msra.mxu0 0.0
          %481 = vmatprep.subr.mxu0 0.0
          %482 = vmatpush1.msra.mxu0 0.0
          %483 = vmatprep.subr.mxu0 0.0
          %484 = vmatpush1.msra.mxu0 0.0
          %485 = vmatprep.subr.mxu0 0.0
          %486 = vmatpush1.msra.mxu0 0.0
          %487 = vmatprep.subr.mxu0 0.0
          %488 = vmatpush1.msra.mxu0 0.0
          %489 = vmatprep.subr.mxu0 0.0
          %490 = vmatpush1.msra.mxu0 0.0
          %491 = vmatprep.subr.mxu0 0.0
          %492 = vmatpush1.msra.mxu0 0.0
          %493 = vmatprep.subr.mxu0 0.0
          %494 = vmatpush1.msra.mxu0 0.0
          %495 = vmatprep.subr.mxu0 0.0
          %496 = vmatpush1.msra.mxu0 0.0
          %497 = vmatprep.subr.mxu0 0.0
          %498 = vmatpush1.msra.mxu0 0.0
          %499 = vmatprep.subr.mxu0 0.0
          %500 = vmatpush1.msra.mxu0 0.0
          %501 = vmatprep.subr.mxu0 0.0
          %502 = vmatpush1.msra.mxu0 0.0
          %503 = vmatprep.subr.mxu0 0.0
          %504 = vmatpush1.msra.mxu0 0.0
          %505 = vmatprep.subr.mxu0 0.0
          %506 = vmatpush1.msra.mxu0 0.0
          %507 = vmatprep.subr.mxu0 0.0
          %508 = vmatpush1.msra.mxu0 0.0
          %509 = vmatprep.subr.mxu0 0.0
          %510 = vmatpush1.msra.mxu0 0.0
          %511 = vmatprep.subr.mxu0 0.0
          %512 = vmatpush1.msra.mxu0 0.0
          %513 = vmatprep.subr.mxu0 0.0
          %514 = vmatpush1.msra.mxu0 0.0
          %515 = vmatprep.subr.mxu0 0.0
          %516 = vmatpush1.msra.mxu0 0.0
          %517 = vmatprep.subr.mxu0 0.0
          %518 = vmatpush1.msra.mxu0 0.0
          %519 = vmatprep.subr.mxu0 0.0
          %520 = vmatpush1.msra.mxu0 0.0
          %521 = vmatprep.subr.mxu0 0.0
          %522 = vmatpush1.msra.mxu0 0.0
          %523 = vmatprep.subr.mxu0 0.0
          %524 = vmatpush1.msra.mxu0 0.0
          %525 = vmatprep.subr.mxu0 0.0
          %526 = vmatpush1.msra.mxu0 0.0
          %527 = vmatprep.mubr.f32.mxu0 0.0
          %528 = vmatmul.mubr.f32.gmra.mrb[0].mxu0 %v458
          %v529 = vpop.f32.mrb[0].mxu0
          %v530 = vadd.f32 0.0, %v529
          %v531 = vpop.f32.mrb[0].mxu0
          %532 = vmatprep.mubr.f32.mxu0 0.0
          %533 = vmatmul.mubr.f32.gmra.mrb[0].mxu0 %v461
          %v534 = vpop.f32.mrb[0].mxu0
          %v535 = vadd.f32 0.0, %v534
          %v536 = vpop.f32.mrb[0].mxu0
          %537 = vdwg.mxu0
          %v539 = vsel %vm456, %v442, 0
          %v542 = vsel %vm456, %v443, 0
          %544 = vmatprep.subr.mxu0 0.0
          %545 = vmatpush1.msra.mxu0 %v444
          %546 = vmatprep.subr.mxu0 0.0
          %547 = vmatpush1.msra.mxu0 %v445
          %548 = vmatprep.subr.mxu0 0.0
          %549 = vmatpush1.msra.mxu0 0.0
          %550 = vmatprep.subr.mxu0 0.0
          %551 = vmatpush1.msra.mxu0 0.0
          %552 = vmatprep.subr.mxu0 0.0
          %553 = vmatpush1.msra.mxu0 0.0
          %554 = vmatprep.subr.mxu0 0.0
          %555 = vmatpush1.msra.mxu0 0.0
          %556 = vmatprep.subr.mxu0 0.0
          %557 = vmatpush1.msra.mxu0 0.0
          %558 = vmatprep.subr.mxu0 0.0
          %559 = vmatpush1.msra.mxu0 0.0
          %560 = vmatprep.subr.mxu0 0.0
          %561 = vmatpush1.msra.mxu0 0.0
          %562 = vmatprep.subr.mxu0 0.0
          %563 = vmatpush1.msra.mxu0 0.0
          %564 = vmatprep.subr.mxu0 0.0
          %565 = vmatpush1.msra.mxu0 0.0
          %566 = vmatprep.subr.mxu0 0.0
          %567 = vmatpush1.msra.mxu0 0.0
          %568 = vmatprep.subr.mxu0 0.0
          %569 = vmatpush1.msra.mxu0 0.0
          %570 = vmatprep.subr.mxu0 0.0
          %571 = vmatpush1.msra.mxu0 0.0
          %572 = vmatprep.subr.mxu0 0.0
          %573 = vmatpush1.msra.mxu0 0.0
          %574 = vmatprep.subr.mxu0 0.0
          %575 = vmatpush1.msra.mxu0 0.0
          %576 = vmatprep.subr.mxu0 0.0
          %577 = vmatpush1.msra.mxu0 0.0
          %578 = vmatprep.subr.mxu0 0.0
          %579 = vmatpush1.msra.mxu0 0.0
          %580 = vmatprep.subr.mxu0 0.0
          %581 = vmatpush1.msra.mxu0 0.0
          %582 = vmatprep.subr.mxu0 0.0
          %583 = vmatpush1.msra.mxu0 0.0
          %584 = vmatprep.subr.mxu0 0.0
          %585 = vmatpush1.msra.mxu0 0.0
          %586 = vmatprep.subr.mxu0 0.0
          %587 = vmatpush1.msra.mxu0 0.0
          %588 = vmatprep.subr.mxu0 0.0
          %589 = vmatpush1.msra.mxu0 0.0
          %590 = vmatprep.subr.mxu0 0.0
          %591 = vmatpush1.msra.mxu0 0.0
          %592 = vmatprep.subr.mxu0 0.0
          %593 = vmatpush1.msra.mxu0 0.0
          %594 = vmatprep.subr.mxu0 0.0
          %595 = vmatpush1.msra.mxu0 0.0
          %596 = vmatprep.subr.mxu0 0.0
          %597 = vmatpush1.msra.mxu0 0.0
          %598 = vmatprep.subr.mxu0 0.0
          %599 = vmatpush1.msra.mxu0 0.0
          %600 = vmatprep.subr.mxu0 0.0
          %601 = vmatpush1.msra.mxu0 0.0
          %602 = vmatprep.subr.mxu0 0.0
          %603 = vmatpush1.msra.mxu0 0.0
          %604 = vmatprep.subr.mxu0 0.0
          %605 = vmatpush1.msra.mxu0 0.0
          %606 = vmatprep.subr.mxu0 0.0
          %607 = vmatpush1.msra.mxu0 0.0
          %608 = vmatprep.mubr.f32.mxu0 0.0
          %609 = vmatmul.mubr.f32.gmra.mrb[0].mxu0 %v539
          %v610 = vpop.f32.mrb[0].mxu0
          %v611 = vadd.f32 %v530, %v610
          %v612 = vpop.f32.mrb[0].mxu0
          %613 = vmatprep.mubr.f32.mxu0 0.0
          %614 = vmatmul.mubr.f32.gmra.mrb[0].mxu0 %v542
          %v615 = vpop.f32.mrb[0].mxu0
          %v616 = vadd.f32 %v535, %v615
          %v617 = vpop.f32.mrb[0].mxu0
          %618 = vdwg.mxu0
          %v619 = vld [vmem:[%s298 + $0x1] sm:$0xff]
          %v620 = vld [vmem:[%s298 + $0x9] sm:$0xff]
          %s621 = scalar_lea.vmem [#allocation5], 128
          %v622 = vld [vmem:[%s621] sm:$0xff]
          %v623 = vld [vmem:[%s621 + $0x8] sm:$0xff]
          %v625 = vsel %vm456, %v619, 0
          %v628 = vsel %vm456, %v620, 0
          %630 = vmatprep.subr.mxu0 0.0
          %631 = vmatpush1.msra.mxu0 %v622
          %632 = vmatprep.subr.mxu0 0.0
          %633 = vmatpush1.msra.mxu0 %v623
          %634 = vmatprep.subr.mxu0 0.0
          %635 = vmatpush1.msra.mxu0 0.0
          %636 = vmatprep.subr.mxu0 0.0
          %637 = vmatpush1.msra.mxu0 0.0
          %638 = vmatprep.subr.mxu0 0.0
          %639 = vmatpush1.msra.mxu0 0.0
          %640 = vmatprep.subr.mxu0 0.0
          %641 = vmatpush1.msra.mxu0 0.0
          %642 = vmatprep.subr.mxu0 0.0
          %643 = vmatpush1.msra.mxu0 0.0
          %644 = vmatprep.subr.mxu0 0.0
          %645 = vmatpush1.msra.mxu0 0.0
          %646 = vmatprep.subr.mxu0 0.0
          %647 = vmatpush1.msra.mxu0 0.0
          %648 = vmatprep.subr.mxu0 0.0
          %649 = vmatpush1.msra.mxu0 0.0
          %650 = vmatprep.subr.mxu0 0.0
          %651 = vmatpush1.msra.mxu0 0.0
          %652 = vmatprep.subr.mxu0 0.0
          %653 = vmatpush1.msra.mxu0 0.0
          %654 = vmatprep.subr.mxu0 0.0
          %655 = vmatpush1.msra.mxu0 0.0
          %656 = vmatprep.subr.mxu0 0.0
          %657 = vmatpush1.msra.mxu0 0.0
          %658 = vmatprep.subr.mxu0 0.0
          %659 = vmatpush1.msra.mxu0 0.0
          %660 = vmatprep.subr.mxu0 0.0
          %661 = vmatpush1.msra.mxu0 0.0
          %662 = vmatprep.subr.mxu0 0.0
          %663 = vmatpush1.msra.mxu0 0.0
          %664 = vmatprep.subr.mxu0 0.0
          %665 = vmatpush1.msra.mxu0 0.0
          %666 = vmatprep.subr.mxu0 0.0
          %667 = vmatpush1.msra.mxu0 0.0
          %668 = vmatprep.subr.mxu0 0.0
          %669 = vmatpush1.msra.mxu0 0.0
          %670 = vmatprep.subr.mxu0 0.0
          %671 = vmatpush1.msra.mxu0 0.0
          %672 = vmatprep.subr.mxu0 0.0
          %673 = vmatpush1.msra.mxu0 0.0
          %674 = vmatprep.subr.mxu0 0.0
          %675 = vmatpush1.msra.mxu0 0.0
          %676 = vmatprep.subr.mxu0 0.0
          %677 = vmatpush1.msra.mxu0 0.0
          %678 = vmatprep.subr.mxu0 0.0
          %679 = vmatpush1.msra.mxu0 0.0
          %680 = vmatprep.subr.mxu0 0.0
          %681 = vmatpush1.msra.mxu0 0.0
          %682 = vmatprep.subr.mxu0 0.0
          %683 = vmatpush1.msra.mxu0 0.0
          %684 = vmatprep.subr.mxu0 0.0
          %685 = vmatpush1.msra.mxu0 0.0
          %686 = vmatprep.subr.mxu0 0.0
          %687 = vmatpush1.msra.mxu0 0.0
          %688 = vmatprep.subr.mxu0 0.0
          %689 = vmatpush1.msra.mxu0 0.0
          %690 = vmatprep.subr.mxu0 0.0
          %691 = vmatpush1.msra.mxu0 0.0
          %692 = vmatprep.subr.mxu0 0.0
          %693 = vmatpush1.msra.mxu0 0.0
          %694 = vmatprep.mubr.f32.mxu0 0.0
          %695 = vmatmul.mubr.f32.gmra.mrb[0].mxu0 %v625
          %v696 = vpop.f32.mrb[0].mxu0
          %v697 = vadd.f32 0.0, %v696
          %v698 = vpop.f32.mrb[0].mxu0
          %699 = vmatprep.mubr.f32.mxu0 0.0
          %700 = vmatmul.mubr.f32.gmra.mrb[0].mxu0 %v628
          %v701 = vpop.f32.mrb[0].mxu0
          %v702 = vadd.f32 0.0, %v701
          %v703 = vpop.f32.mrb[0].mxu0
          %704 = vdwg.mxu0
          %v706 = vsel %vm456, %v446, 0
          %v709 = vsel %vm456, %v447, 0
          %711 = vmatprep.subr.mxu0 0.0
          %712 = vmatpush1.msra.mxu0 %v449
          %713 = vmatprep.subr.mxu0 0.0
          %714 = vmatpush1.msra.mxu0 %v450
          %715 = vmatprep.subr.mxu0 0.0
          %716 = vmatpush1.msra.mxu0 0.0
          %717 = vmatprep.subr.mxu0 0.0
          %718 = vmatpush1.msra.mxu0 0.0
          %719 = vmatprep.subr.mxu0 0.0
          %720 = vmatpush1.msra.mxu0 0.0
          %721 = vmatprep.subr.mxu0 0.0
          %722 = vmatpush1.msra.mxu0 0.0
          %723 = vmatprep.subr.mxu0 0.0
          %724 = vmatpush1.msra.mxu0 0.0
          %725 = vmatprep.subr.mxu0 0.0
          %726 = vmatpush1.msra.mxu0 0.0
          %727 = vmatprep.subr.mxu0 0.0
          %728 = vmatpush1.msra.mxu0 0.0
          %729 = vmatprep.subr.mxu0 0.0
          %730 = vmatpush1.msra.mxu0 0.0
          %731 = vmatprep.subr.mxu0 0.0
          %732 = vmatpush1.msra.mxu0 0.0
          %733 = vmatprep.subr.mxu0 0.0
          %734 = vmatpush1.msra.mxu0 0.0
          %735 = vmatprep.subr.mxu0 0.0
          %736 = vmatpush1.msra.mxu0 0.0
          %737 = vmatprep.subr.mxu0 0.0
          %738 = vmatpush1.msra.mxu0 0.0
          %739 = vmatprep.subr.mxu0 0.0
          %740 = vmatpush1.msra.mxu0 0.0
          %741 = vmatprep.subr.mxu0 0.0
          %742 = vmatpush1.msra.mxu0 0.0
          %743 = vmatprep.subr.mxu0 0.0
          %744 = vmatpush1.msra.mxu0 0.0
          %745 = vmatprep.subr.mxu0 0.0
          %746 = vmatpush1.msra.mxu0 0.0
          %747 = vmatprep.subr.mxu0 0.0
          %748 = vmatpush1.msra.mxu0 0.0
          %749 = vmatprep.subr.mxu0 0.0
          %750 = vmatpush1.msra.mxu0 0.0
          %751 = vmatprep.subr.mxu0 0.0
          %752 = vmatpush1.msra.mxu0 0.0
          %753 = vmatprep.subr.mxu0 0.0
          %754 = vmatpush1.msra.mxu0 0.0
          %755 = vmatprep.subr.mxu0 0.0
          %756 = vmatpush1.msra.mxu0 0.0
          %757 = vmatprep.subr.mxu0 0.0
          %758 = vmatpush1.msra.mxu0 0.0
          %759 = vmatprep.subr.mxu0 0.0
          %760 = vmatpush1.msra.mxu0 0.0
          %761 = vmatprep.subr.mxu0 0.0
          %762 = vmatpush1.msra.mxu0 0.0
          %763 = vmatprep.subr.mxu0 0.0
          %764 = vmatpush1.msra.mxu0 0.0
          %765 = vmatprep.subr.mxu0 0.0
          %766 = vmatpush1.msra.mxu0 0.0
          %767 = vmatprep.subr.mxu0 0.0
          %768 = vmatpush1.msra.mxu0 0.0
          %769 = vmatprep.subr.mxu0 0.0
          %770 = vmatpush1.msra.mxu0 0.0
          %771 = vmatprep.subr.mxu0 0.0
          %772 = vmatpush1.msra.mxu0 0.0
          %773 = vmatprep.subr.mxu0 0.0
          %774 = vmatpush1.msra.mxu0 0.0
          %775 = vmatprep.mubr.f32.mxu0 0.0
          %776 = vmatmul.mubr.f32.gmra.mrb[0].mxu0 %v706
          %v777 = vpop.f32.mrb[0].mxu0
          %v778 = vadd.f32 %v697, %v777
          %v779 = vpop.f32.mrb[0].mxu0
          %780 = vmatprep.mubr.f32.mxu0 0.0
          %781 = vmatmul.mubr.f32.gmra.mrb[0].mxu0 %v709
          %v782 = vpop.f32.mrb[0].mxu0
          %v783 = vadd.f32 %v702, %v782
          %v784 = vpop.f32.mrb[0].mxu0
          %785 = vdwg.mxu0
          %v786 = vld [vmem:[#allocation4 + $0x2] sm:$0xff]
          %v787 = vld [vmem:[#allocation4 + $0xa] sm:$0xff]
          %s788 = scalar_lea.vmem [#allocation5], 32
          %v789 = vld [vmem:[%s788] sm:$0xff]
          %v790 = vld [vmem:[%s788 + $0x8] sm:$0xff]
          %v792 = vsel %vm456, %v786, 0
          %v795 = vsel %vm456, %v787, 0
          %797 = vmatprep.subr.mxu0 0.0
          %798 = vmatpush1.msra.mxu0 %v789
          %799 = vmatprep.subr.mxu0 0.0
          %800 = vmatpush1.msra.mxu0 %v790
          %801 = vmatprep.subr.mxu0 0.0
          %802 = vmatpush1.msra.mxu0 0.0
          %803 = vmatprep.subr.mxu0 0.0
          %804 = vmatpush1.msra.mxu0 0.0
          %805 = vmatprep.subr.mxu0 0.0
          %806 = vmatpush1.msra.mxu0 0.0
          %807 = vmatprep.subr.mxu0 0.0
          %808 = vmatpush1.msra.mxu0 0.0
          %809 = vmatprep.subr.mxu0 0.0
          %810 = vmatpush1.msra.mxu0 0.0
          %811 = vmatprep.subr.mxu0 0.0
          %812 = vmatpush1.msra.mxu0 0.0
          %813 = vmatprep.subr.mxu0 0.0
          %814 = vmatpush1.msra.mxu0 0.0
          %815 = vmatprep.subr.mxu0 0.0
          %816 = vmatpush1.msra.mxu0 0.0
          %817 = vmatprep.subr.mxu0 0.0
          %818 = vmatpush1.msra.mxu0 0.0
          %819 = vmatprep.subr.mxu0 0.0
          %820 = vmatpush1.msra.mxu0 0.0
          %821 = vmatprep.subr.mxu0 0.0
          %822 = vmatpush1.msra.mxu0 0.0
          %823 = vmatprep.subr.mxu0 0.0
          %824 = vmatpush1.msra.mxu0 0.0
          %825 = vmatprep.subr.mxu0 0.0
          %826 = vmatpush1.msra.mxu0 0.0
          %827 = vmatprep.subr.mxu0 0.0
          %828 = vmatpush1.msra.mxu0 0.0
          %829 = vmatprep.subr.mxu0 0.0
          %830 = vmatpush1.msra.mxu0 0.0
          %831 = vmatprep.subr.mxu0 0.0
          %832 = vmatpush1.msra.mxu0 0.0
          %833 = vmatprep.subr.mxu0 0.0
          %834 = vmatpush1.msra.mxu0 0.0
          %835 = vmatprep.subr.mxu0 0.0
          %836 = vmatpush1.msra.mxu0 0.0
          %837 = vmatprep.subr.mxu0 0.0
          %838 = vmatpush1.msra.mxu0 0.0
          %839 = vmatprep.subr.mxu0 0.0
          %840 = vmatpush1.msra.mxu0 0.0
          %841 = vmatprep.subr.mxu0 0.0
          %842 = vmatpush1.msra.mxu0 0.0
          %843 = vmatprep.subr.mxu0 0.0
          %844 = vmatpush1.msra.mxu0 0.0
          %845 = vmatprep.subr.mxu0 0.0
          %846 = vmatpush1.msra.mxu0 0.0
          %847 = vmatprep.subr.mxu0 0.0
          %848 = vmatpush1.msra.mxu0 0.0
          %849 = vmatprep.subr.mxu0 0.0
          %850 = vmatpush1.msra.mxu0 0.0
          %851 = vmatprep.subr.mxu0 0.0
          %852 = vmatpush1.msra.mxu0 0.0
          %853 = vmatprep.subr.mxu0 0.0
          %854 = vmatpush1.msra.mxu0 0.0
          %855 = vmatprep.subr.mxu0 0.0
          %856 = vmatpush1.msra.mxu0 0.0
          %857 = vmatprep.subr.mxu0 0.0
          %858 = vmatpush1.msra.mxu0 0.0
          %859 = vmatprep.subr.mxu0 0.0
          %860 = vmatpush1.msra.mxu0 0.0
          %861 = vmatprep.mubr.f32.mxu0 0.0
          %862 = vmatmul.mubr.f32.gmra.mrb[0].mxu0 %v792
          %v863 = vpop.f32.mrb[0].mxu0
          %v864 = vadd.f32 0.0, %v863
          %v865 = vpop.f32.mrb[0].mxu0
          %866 = vmatprep.mubr.f32.mxu0 0.0
          %867 = vmatmul.mubr.f32.gmra.mrb[0].mxu0 %v795
          %v868 = vpop.f32.mrb[0].mxu0
          %v869 = vadd.f32 0.0, %v868
          %v870 = vpop.f32.mrb[0].mxu0
          %871 = vdwg.mxu0
          %v872 = vadd.f32 %v611, %v864
          %v873 = vadd.f32 %v616, %v869
          %v874 = vld [vmem:[%s298 + $0x2] sm:$0xff]
          %v875 = vld [vmem:[%s298 + $0xa] sm:$0xff]
          %s876 = scalar_lea.vmem [#allocation5], 144
          %v877 = vld [vmem:[%s876] sm:$0xff]
          %v878 = vld [vmem:[%s876 + $0x8] sm:$0xff]
          %v880 = vsel %vm456, %v874, 0
          %v883 = vsel %vm456, %v875, 0
          %885 = vmatprep.subr.mxu0 0.0
          %886 = vmatpush1.msra.mxu0 %v877
          %887 = vmatprep.subr.mxu0 0.0
          %888 = vmatpush1.msra.mxu0 %v878
          %889 = vmatprep.subr.mxu0 0.0
          %890 = vmatpush1.msra.mxu0 0.0
          %891 = vmatprep.subr.mxu0 0.0
          %892 = vmatpush1.msra.mxu0 0.0
          %893 = vmatprep.subr.mxu0 0.0
          %894 = vmatpush1.msra.mxu0 0.0
          %895 = vmatprep.subr.mxu0 0.0
          %896 = vmatpush1.msra.mxu0 0.0
          %897 = vmatprep.subr.mxu0 0.0
          %898 = vmatpush1.msra.mxu0 0.0
          %899 = vmatprep.subr.mxu0 0.0
          %900 = vmatpush1.msra.mxu0 0.0
          %901 = vmatprep.subr.mxu0 0.0
          %902 = vmatpush1.msra.mxu0 0.0
          %903 = vmatprep.subr.mxu0 0.0
          %904 = vmatpush1.msra.mxu0 0.0
          %905 = vmatprep.subr.mxu0 0.0
          %906 = vmatpush1.msra.mxu0 0.0
          %907 = vmatprep.subr.mxu0 0.0
          %908 = vmatpush1.msra.mxu0 0.0
          %909 = vmatprep.subr.mxu0 0.0
          %910 = vmatpush1.msra.mxu0 0.0
          %911 = vmatprep.subr.mxu0 0.0
          %912 = vmatpush1.msra.mxu0 0.0
          %913 = vmatprep.subr.mxu0 0.0
          %914 = vmatpush1.msra.mxu0 0.0
          %915 = vmatprep.subr.mxu0 0.0
          %916 = vmatpush1.msra.mxu0 0.0
          %917 = vmatprep.subr.mxu0 0.0
          %918 = vmatpush1.msra.mxu0 0.0
          %919 = vmatprep.subr.mxu0 0.0
          %920 = vmatpush1.msra.mxu0 0.0
          %921 = vmatprep.subr.mxu0 0.0
          %922 = vmatpush1.msra.mxu0 0.0
          %923 = vmatprep.subr.mxu0 0.0
          %924 = vmatpush1.msra.mxu0 0.0
          %925 = vmatprep.subr.mxu0 0.0
          %926 = vmatpush1.msra.mxu0 0.0
          %927 = vmatprep.subr.mxu0 0.0
          %928 = vmatpush1.msra.mxu0 0.0
          %929 = vmatprep.subr.mxu0 0.0
          %930 = vmatpush1.msra.mxu0 0.0
          %931 = vmatprep.subr.mxu0 0.0
          %932 = vmatpush1.msra.mxu0 0.0
          %933 = vmatprep.subr.mxu0 0.0
          %934 = vmatpush1.msra.mxu0 0.0
          %935 = vmatprep.subr.mxu0 0.0
          %936 = vmatpush1.msra.mxu0 0.0
          %937 = vmatprep.subr.mxu0 0.0
          %938 = vmatpush1.msra.mxu0 0.0
          %939 = vmatprep.subr.mxu0 0.0
          %940 = vmatpush1.msra.mxu0 0.0
          %941 = vmatprep.subr.mxu0 0.0
          %942 = vmatpush1.msra.mxu0 0.0
          %943 = vmatprep.subr.mxu0 0.0
          %944 = vmatpush1.msra.mxu0 0.0
          %945 = vmatprep.subr.mxu0 0.0
          %946 = vmatpush1.msra.mxu0 0.0
          %947 = vmatprep.subr.mxu0 0.0
          %948 = vmatpush1.msra.mxu0 0.0
          %949 = vmatprep.mubr.f32.mxu0 0.0
          %950 = vmatmul.mubr.f32.gmra.mrb[0].mxu0 %v880
          %v951 = vpop.f32.mrb[0].mxu0
          %v952 = vadd.f32 0.0, %v951
          %v953 = vpop.f32.mrb[0].mxu0
          %954 = vmatprep.mubr.f32.mxu0 0.0
          %955 = vmatmul.mubr.f32.gmra.mrb[0].mxu0 %v883
          %v956 = vpop.f32.mrb[0].mxu0
          %v957 = vadd.f32 0.0, %v956
          %v958 = vpop.f32.mrb[0].mxu0
          %959 = vdwg.mxu0
          %v960 = vadd.f32 %v778, %v952
          %v961 = vadd.f32 %v783, %v957
          %v962 = vld [vmem:[#allocation4 + $0x3] sm:$0xff]
          %v963 = vld [vmem:[#allocation4 + $0xb] sm:$0xff]
          %s964 = scalar_lea.vmem [#allocation5], 48
          %v965 = vld [vmem:[%s964] sm:$0xff]
          %v966 = vld [vmem:[%s964 + $0x8] sm:$0xff]
          %v968 = vsel %vm456, %v962, 0
          %v971 = vsel %vm456, %v963, 0
          %973 = vmatprep.subr.mxu0 0.0
          %974 = vmatpush1.msra.mxu0 %v965
          %975 = vmatprep.subr.mxu0 0.0
          %976 = vmatpush1.msra.mxu0 %v966
          %977 = vmatprep.subr.mxu0 0.0
          %978 = vmatpush1.msra.mxu0 0.0
          %979 = vmatprep.subr.mxu0 0.0
          %980 = vmatpush1.msra.mxu0 0.0
          %981 = vmatprep.subr.mxu0 0.0
          %982 = vmatpush1.msra.mxu0 0.0
          %983 = vmatprep.subr.mxu0 0.0
          %984 = vmatpush1.msra.mxu0 0.0
          %985 = vmatprep.subr.mxu0 0.0
          %986 = vmatpush1.msra.mxu0 0.0
          %987 = vmatprep.subr.mxu0 0.0
          %988 = vmatpush1.msra.mxu0 0.0
          %989 = vmatprep.subr.mxu0 0.0
          %990 = vmatpush1.msra.mxu0 0.0
          %991 = vmatprep.subr.mxu0 0.0
          %992 = vmatpush1.msra.mxu0 0.0
          %993 = vmatprep.subr.mxu0 0.0
          %994 = vmatpush1.msra.mxu0 0.0
          %995 = vmatprep.subr.mxu0 0.0
          %996 = vmatpush1.msra.mxu0 0.0
          %997 = vmatprep.subr.mxu0 0.0
          %998 = vmatpush1.msra.mxu0 0.0
          %999 = vmatprep.subr.mxu0 0.0
          %1000 = vmatpush1.msra.mxu0 0.0
          %1001 = vmatprep.subr.mxu0 0.0
          %1002 = vmatpush1.msra.mxu0 0.0
          %1003 = vmatprep.subr.mxu0 0.0
          %1004 = vmatpush1.msra.mxu0 0.0
          %1005 = vmatprep.subr.mxu0 0.0
          %1006 = vmatpush1.msra.mxu0 0.0
          %1007 = vmatprep.subr.mxu0 0.0
          %1008 = vmatpush1.msra.mxu0 0.0
          %1009 = vmatprep.subr.mxu0 0.0
          %1010 = vmatpush1.msra.mxu0 0.0
          %1011 = vmatprep.subr.mxu0 0.0
          %1012 = vmatpush1.msra.mxu0 0.0
          %1013 = vmatprep.subr.mxu0 0.0
          %1014 = vmatpush1.msra.mxu0 0.0
          %1015 = vmatprep.subr.mxu0 0.0
          %1016 = vmatpush1.msra.mxu0 0.0
          %1017 = vmatprep.subr.mxu0 0.0
          %1018 = vmatpush1.msra.mxu0 0.0
          %1019 = vmatprep.subr.mxu0 0.0
          %1020 = vmatpush1.msra.mxu0 0.0
          %1021 = vmatprep.subr.mxu0 0.0
          %1022 = vmatpush1.msra.mxu0 0.0
          %1023 = vmatprep.subr.mxu0 0.0
          %1024 = vmatpush1.msra.mxu0 0.0
          %1025 = vmatprep.subr.mxu0 0.0
          %1026 = vmatpush1.msra.mxu0 0.0
          %1027 = vmatprep.subr.mxu0 0.0
          %1028 = vmatpush1.msra.mxu0 0.0
          %1029 = vmatprep.subr.mxu0 0.0
          %1030 = vmatpush1.msra.mxu0 0.0
          %1031 = vmatprep.subr.mxu0 0.0
          %1032 = vmatpush1.msra.mxu0 0.0
          %1033 = vmatprep.subr.mxu0 0.0
          %1034 = vmatpush1.msra.mxu0 0.0
          %1035 = vmatprep.subr.mxu0 0.0
          %1036 = vmatpush1.msra.mxu0 0.0
          %1037 = vmatprep.mubr.f32.mxu0 0.0
          %1038 = vmatmul.mubr.f32.gmra.mrb[0].mxu0 %v968
          %v1039 = vpop.f32.mrb[0].mxu0
          %v1040 = vadd.f32 0.0, %v1039
          %v1041 = vpop.f32.mrb[0].mxu0
          %1042 = vmatprep.mubr.f32.mxu0 0.0
          %1043 = vmatmul.mubr.f32.gmra.mrb[0].mxu0 %v971
          %v1044 = vpop.f32.mrb[0].mxu0
          %v1045 = vadd.f32 0.0, %v1044
          %v1046 = vpop.f32.mrb[0].mxu0
          %1047 = vdwg.mxu0
          %v1048 = vadd.f32 %v872, %v1040
          %v1049 = vadd.f32 %v873, %v1045
          %v1050 = vld [vmem:[%s298 + $0x3] sm:$0xff]
          %v1051 = vld [vmem:[%s298 + $0xb] sm:$0xff]
          %s1052 = scalar_lea.vmem [#allocation5], 160
          %v1053 = vld [vmem:[%s1052] sm:$0xff]
          %v1054 = vld [vmem:[%s1052 + $0x8] sm:$0xff]
          %v1056 = vsel %vm456, %v1050, 0
          %v1059 = vsel %vm456, %v1051, 0
          %1061 = vmatprep.subr.mxu0 0.0
          %1062 = vmatpush1.msra.mxu0 %v1053
          %1063 = vmatprep.subr.mxu0 0.0
          %1064 = vmatpush1.msra.mxu0 %v1054
          %1065 = vmatprep.subr.mxu0 0.0
          %1066 = vmatpush1.msra.mxu0 0.0
          %1067 = vmatprep.subr.mxu0 0.0
          %1068 = vmatpush1.msra.mxu0 0.0
          %1069 = vmatprep.subr.mxu0 0.0
          %1070 = vmatpush1.msra.mxu0 0.0
          %1071 = vmatprep.subr.mxu0 0.0
          %1072 = vmatpush1.msra.mxu0 0.0
          %1073 = vmatprep.subr.mxu0 0.0
          %1074 = vmatpush1.msra.mxu0 0.0
          %1075 = vmatprep.subr.mxu0 0.0
          %1076 = vmatpush1.msra.mxu0 0.0
          %1077 = vmatprep.subr.mxu0 0.0
          %1078 = vmatpush1.msra.mxu0 0.0
          %1079 = vmatprep.subr.mxu0 0.0
          %1080 = vmatpush1.msra.mxu0 0.0
          %1081 = vmatprep.subr.mxu0 0.0
          %1082 = vmatpush1.msra.mxu0 0.0
          %1083 = vmatprep.subr.mxu0 0.0
          %1084 = vmatpush1.msra.mxu0 0.0
          %1085 = vmatprep.subr.mxu0 0.0
          %1086 = vmatpush1.msra.mxu0 0.0
          %1087 = vmatprep.subr.mxu0 0.0
          %1088 = vmatpush1.msra.mxu0 0.0
          %1089 = vmatprep.subr.mxu0 0.0
          %1090 = vmatpush1.msra.mxu0 0.0
          %1091 = vmatprep.subr.mxu0 0.0
          %1092 = vmatpush1.msra.mxu0 0.0
          %1093 = vmatprep.subr.mxu0 0.0
          %1094 = vmatpush1.msra.mxu0 0.0
          %1095 = vmatprep.subr.mxu0 0.0
          %1096 = vmatpush1.msra.mxu0 0.0
          %1097 = vmatprep.subr.mxu0 0.0
          %1098 = vmatpush1.msra.mxu0 0.0
          %1099 = vmatprep.subr.mxu0 0.0
          %1100 = vmatpush1.msra.mxu0 0.0
          %1101 = vmatprep.subr.mxu0 0.0
          %1102 = vmatpush1.msra.mxu0 0.0
          %1103 = vmatprep.subr.mxu0 0.0
          %1104 = vmatpush1.msra.mxu0 0.0
          %1105 = vmatprep.subr.mxu0 0.0
          %1106 = vmatpush1.msra.mxu0 0.0
          %1107 = vmatprep.subr.mxu0 0.0
          %1108 = vmatpush1.msra.mxu0 0.0
          %1109 = vmatprep.subr.mxu0 0.0
          %1110 = vmatpush1.msra.mxu0 0.0
          %1111 = vmatprep.subr.mxu0 0.0
          %1112 = vmatpush1.msra.mxu0 0.0
          %1113 = vmatprep.subr.mxu0 0.0
          %1114 = vmatpush1.msra.mxu0 0.0
          %1115 = vmatprep.subr.mxu0 0.0
          %1116 = vmatpush1.msra.mxu0 0.0
          %1117 = vmatprep.subr.mxu0 0.0
          %1118 = vmatpush1.msra.mxu0 0.0
          %1119 = vmatprep.subr.mxu0 0.0
          %1120 = vmatpush1.msra.mxu0 0.0
          %1121 = vmatprep.subr.mxu0 0.0
          %1122 = vmatpush1.msra.mxu0 0.0
          %1123 = vmatprep.subr.mxu0 0.0
          %1124 = vmatpush1.msra.mxu0 0.0
          %1125 = vmatprep.mubr.f32.mxu0 0.0
          %1126 = vmatmul.mubr.f32.gmra.mrb[0].mxu0 %v1056
          %v1127 = vpop.f32.mrb[0].mxu0
          %v1128 = vadd.f32 0.0, %v1127
          %v1129 = vpop.f32.mrb[0].mxu0
          %1130 = vmatprep.mubr.f32.mxu0 0.0
          %1131 = vmatmul.mubr.f32.gmra.mrb[0].mxu0 %v1059
          %v1132 = vpop.f32.mrb[0].mxu0
          %v1133 = vadd.f32 0.0, %v1132
          %v1134 = vpop.f32.mrb[0].mxu0
          %1135 = vdwg.mxu0
          %v1136 = vadd.f32 %v960, %v1128
          %v1137 = vadd.f32 %v961, %v1133
          %v1138 = vld [vmem:[#allocation4 + $0x4] sm:$0xff]
          %v1139 = vld [vmem:[#allocation4 + $0xc] sm:$0xff]
          %s1140 = scalar_lea.vmem [#allocation5], 64
          %v1141 = vld [vmem:[%s1140] sm:$0xff]
          %v1142 = vld [vmem:[%s1140 + $0x8] sm:$0xff]
          %v1144 = vsel %vm456, %v1138, 0
          %v1147 = vsel %vm456, %v1139, 0
          %1149 = vmatprep.subr.mxu0 0.0
          %1150 = vmatpush1.msra.mxu0 %v1141
          %1151 = vmatprep.subr.mxu0 0.0
          %1152 = vmatpush1.msra.mxu0 %v1142
          %1153 = vmatprep.subr.mxu0 0.0
          %1154 = vmatpush1.msra.mxu0 0.0
          %1155 = vmatprep.subr.mxu0 0.0
          %1156 = vmatpush1.msra.mxu0 0.0
          %1157 = vmatprep.subr.mxu0 0.0
          %1158 = vmatpush1.msra.mxu0 0.0
          %1159 = vmatprep.subr.mxu0 0.0
          %1160 = vmatpush1.msra.mxu0 0.0
          %1161 = vmatprep.subr.mxu0 0.0
          %1162 = vmatpush1.msra.mxu0 0.0
          %1163 = vmatprep.subr.mxu0 0.0
          %1164 = vmatpush1.msra.mxu0 0.0
          %1165 = vmatprep.subr.mxu0 0.0
          %1166 = vmatpush1.msra.mxu0 0.0
          %1167 = vmatprep.subr.mxu0 0.0
          %1168 = vmatpush1.msra.mxu0 0.0
          %1169 = vmatprep.subr.mxu0 0.0
          %1170 = vmatpush1.msra.mxu0 0.0
          %1171 = vmatprep.subr.mxu0 0.0
          %1172 = vmatpush1.msra.mxu0 0.0
          %1173 = vmatprep.subr.mxu0 0.0
          %1174 = vmatpush1.msra.mxu0 0.0
          %1175 = vmatprep.subr.mxu0 0.0
          %1176 = vmatpush1.msra.mxu0 0.0
          %1177 = vmatprep.subr.mxu0 0.0
          %1178 = vmatpush1.msra.mxu0 0.0
          %1179 = vmatprep.subr.mxu0 0.0
          %1180 = vmatpush1.msra.mxu0 0.0
          %1181 = vmatprep.subr.mxu0 0.0
          %1182 = vmatpush1.msra.mxu0 0.0
          %1183 = vmatprep.subr.mxu0 0.0
          %1184 = vmatpush1.msra.mxu0 0.0
          %1185 = vmatprep.subr.mxu0 0.0
          %1186 = vmatpush1.msra.mxu0 0.0
          %1187 = vmatprep.subr.mxu0 0.0
          %1188 = vmatpush1.msra.mxu0 0.0
          %1189 = vmatprep.subr.mxu0 0.0
          %1190 = vmatpush1.msra.mxu0 0.0
          %1191 = vmatprep.subr.mxu0 0.0
          %1192 = vmatpush1.msra.mxu0 0.0
          %1193 = vmatprep.subr.mxu0 0.0
          %1194 = vmatpush1.msra.mxu0 0.0
          %1195 = vmatprep.subr.mxu0 0.0
          %1196 = vmatpush1.msra.mxu0 0.0
          %1197 = vmatprep.subr.mxu0 0.0
          %1198 = vmatpush1.msra.mxu0 0.0
          %1199 = vmatprep.subr.mxu0 0.0
          %1200 = vmatpush1.msra.mxu0 0.0
          %1201 = vmatprep.subr.mxu0 0.0
          %1202 = vmatpush1.msra.mxu0 0.0
          %1203 = vmatprep.subr.mxu0 0.0
          %1204 = vmatpush1.msra.mxu0 0.0
          %1205 = vmatprep.subr.mxu0 0.0
          %1206 = vmatpush1.msra.mxu0 0.0
          %1207 = vmatprep.subr.mxu0 0.0
          %1208 = vmatpush1.msra.mxu0 0.0
          %1209 = vmatprep.subr.mxu0 0.0
          %1210 = vmatpush1.msra.mxu0 0.0
          %1211 = vmatprep.subr.mxu0 0.0
          %1212 = vmatpush1.msra.mxu0 0.0
          %1213 = vmatprep.mubr.f32.mxu0 0.0
          %1214 = vmatmul.mubr.f32.gmra.mrb[0].mxu0 %v1144
          %v1215 = vpop.f32.mrb[0].mxu0
          %v1216 = vadd.f32 0.0, %v1215
          %v1217 = vpop.f32.mrb[0].mxu0
          %1218 = vmatprep.mubr.f32.mxu0 0.0
          %1219 = vmatmul.mubr.f32.gmra.mrb[0].mxu0 %v1147
          %v1220 = vpop.f32.mrb[0].mxu0
          %v1221 = vadd.f32 0.0, %v1220
          %v1222 = vpop.f32.mrb[0].mxu0
          %1223 = vdwg.mxu0
          %v1224 = vadd.f32 %v1048, %v1216
          %v1225 = vadd.f32 %v1049, %v1221
          %v1226 = vld [vmem:[%s298 + $0x4] sm:$0xff]
          %v1227 = vld [vmem:[%s298 + $0xc] sm:$0xff]
          %s1228 = scalar_lea.vmem [#allocation5], 176
          %v1229 = vld [vmem:[%s1228] sm:$0xff]
          %v1230 = vld [vmem:[%s1228 + $0x8] sm:$0xff]
          %v1232 = vsel %vm456, %v1226, 0
          %v1235 = vsel %vm456, %v1227, 0
          %1237 = vmatprep.subr.mxu0 0.0
          %1238 = vmatpush1.msra.mxu0 %v1229
          %1239 = vmatprep.subr.mxu0 0.0
          %1240 = vmatpush1.msra.mxu0 %v1230
          %1241 = vmatprep.subr.mxu0 0.0
          %1242 = vmatpush1.msra.mxu0 0.0
          %1243 = vmatprep.subr.mxu0 0.0
          %1244 = vmatpush1.msra.mxu0 0.0
          %1245 = vmatprep.subr.mxu0 0.0
          %1246 = vmatpush1.msra.mxu0 0.0
          %1247 = vmatprep.subr.mxu0 0.0
          %1248 = vmatpush1.msra.mxu0 0.0
          %1249 = vmatprep.subr.mxu0 0.0
          %1250 = vmatpush1.msra.mxu0 0.0
          %1251 = vmatprep.subr.mxu0 0.0
          %1252 = vmatpush1.msra.mxu0 0.0
          %1253 = vmatprep.subr.mxu0 0.0
          %1254 = vmatpush1.msra.mxu0 0.0
          %1255 = vmatprep.subr.mxu0 0.0
          %1256 = vmatpush1.msra.mxu0 0.0
          %1257 = vmatprep.subr.mxu0 0.0
          %1258 = vmatpush1.msra.mxu0 0.0
          %1259 = vmatprep.subr.mxu0 0.0
          %1260 = vmatpush1.msra.mxu0 0.0
          %1261 = vmatprep.subr.mxu0 0.0
          %1262 = vmatpush1.msra.mxu0 0.0
          %1263 = vmatprep.subr.mxu0 0.0
          %1264 = vmatpush1.msra.mxu0 0.0
          %1265 = vmatprep.subr.mxu0 0.0
          %1266 = vmatpush1.msra.mxu0 0.0
          %1267 = vmatprep.subr.mxu0 0.0
          %1268 = vmatpush1.msra.mxu0 0.0
          %1269 = vmatprep.subr.mxu0 0.0
          %1270 = vmatpush1.msra.mxu0 0.0
          %1271 = vmatprep.subr.mxu0 0.0
          %1272 = vmatpush1.msra.mxu0 0.0
          %1273 = vmatprep.subr.mxu0 0.0
          %1274 = vmatpush1.msra.mxu0 0.0
          %1275 = vmatprep.subr.mxu0 0.0
          %1276 = vmatpush1.msra.mxu0 0.0
          %1277 = vmatprep.subr.mxu0 0.0
          %1278 = vmatpush1.msra.mxu0 0.0
          %1279 = vmatprep.subr.mxu0 0.0
          %1280 = vmatpush1.msra.mxu0 0.0
          %1281 = vmatprep.subr.mxu0 0.0
          %1282 = vmatpush1.msra.mxu0 0.0
          %1283 = vmatprep.subr.mxu0 0.0
          %1284 = vmatpush1.msra.mxu0 0.0
          %1285 = vmatprep.subr.mxu0 0.0
          %1286 = vmatpush1.msra.mxu0 0.0
          %1287 = vmatprep.subr.mxu0 0.0
          %1288 = vmatpush1.msra.mxu0 0.0
          %1289 = vmatprep.subr.mxu0 0.0
          %1290 = vmatpush1.msra.mxu0 0.0
          %1291 = vmatprep.subr.mxu0 0.0
          %1292 = vmatpush1.msra.mxu0 0.0
          %1293 = vmatprep.subr.mxu0 0.0
          %1294 = vmatpush1.msra.mxu0 0.0
          %1295 = vmatprep.subr.mxu0 0.0
          %1296 = vmatpush1.msra.mxu0 0.0
          %1297 = vmatprep.subr.mxu0 0.0
          %1298 = vmatpush1.msra.mxu0 0.0
          %1299 = vmatprep.subr.mxu0 0.0
          %1300 = vmatpush1.msra.mxu0 0.0
          %1301 = vmatprep.mubr.f32.mxu0 0.0
          %1302 = vmatmul.mubr.f32.gmra.mrb[0].mxu0 %v1232
          %v1303 = vpop.f32.mrb[0].mxu0
          %v1304 = vadd.f32 0.0, %v1303
          %v1305 = vpop.f32.mrb[0].mxu0
          %1306 = vmatprep.mubr.f32.mxu0 0.0
          %1307 = vmatmul.mubr.f32.gmra.mrb[0].mxu0 %v1235
          %v1308 = vpop.f32.mrb[0].mxu0
          %v1309 = vadd.f32 0.0, %v1308
          %v1310 = vpop.f32.mrb[0].mxu0
          %1311 = vdwg.mxu0
          %v1312 = vadd.f32 %v1136, %v1304
          %v1313 = vadd.f32 %v1137, %v1309
          %v1314 = vld [vmem:[#allocation4 + $0x5] sm:$0xff]
          %v1315 = vld [vmem:[#allocation4 + $0xd] sm:$0xff]
          %s1316 = scalar_lea.vmem [#allocation5], 80
          %v1317 = vld [vmem:[%s1316] sm:$0xff]
          %v1318 = vld [vmem:[%s1316 + $0x8] sm:$0xff]
          %v1320 = vsel %vm456, %v1314, 0
          %v1323 = vsel %vm456, %v1315, 0
          %1325 = vmatprep.subr.mxu0 0.0
          %1326 = vmatpush1.msra.mxu0 %v1317
          %1327 = vmatprep.subr.mxu0 0.0
          %1328 = vmatpush1.msra.mxu0 %v1318
          %1329 = vmatprep.subr.mxu0 0.0
          %1330 = vmatpush1.msra.mxu0 0.0
          %1331 = vmatprep.subr.mxu0 0.0
          %1332 = vmatpush1.msra.mxu0 0.0
          %1333 = vmatprep.subr.mxu0 0.0
          %1334 = vmatpush1.msra.mxu0 0.0
          %1335 = vmatprep.subr.mxu0 0.0
          %1336 = vmatpush1.msra.mxu0 0.0
          %1337 = vmatprep.subr.mxu0 0.0
          %1338 = vmatpush1.msra.mxu0 0.0
          %1339 = vmatprep.subr.mxu0 0.0
          %1340 = vmatpush1.msra.mxu0 0.0
          %1341 = vmatprep.subr.mxu0 0.0
          %1342 = vmatpush1.msra.mxu0 0.0
          %1343 = vmatprep.subr.mxu0 0.0
          %1344 = vmatpush1.msra.mxu0 0.0
          %1345 = vmatprep.subr.mxu0 0.0
          %1346 = vmatpush1.msra.mxu0 0.0
          %1347 = vmatprep.subr.mxu0 0.0
          %1348 = vmatpush1.msra.mxu0 0.0
          %1349 = vmatprep.subr.mxu0 0.0
          %1350 = vmatpush1.msra.mxu0 0.0
          %1351 = vmatprep.subr.mxu0 0.0
          %1352 = vmatpush1.msra.mxu0 0.0
          %1353 = vmatprep.subr.mxu0 0.0
          %1354 = vmatpush1.msra.mxu0 0.0
          %1355 = vmatprep.subr.mxu0 0.0
          %1356 = vmatpush1.msra.mxu0 0.0
          %1357 = vmatprep.subr.mxu0 0.0
          %1358 = vmatpush1.msra.mxu0 0.0
          %1359 = vmatprep.subr.mxu0 0.0
          %1360 = vmatpush1.msra.mxu0 0.0
          %1361 = vmatprep.subr.mxu0 0.0
          %1362 = vmatpush1.msra.mxu0 0.0
          %1363 = vmatprep.subr.mxu0 0.0
          %1364 = vmatpush1.msra.mxu0 0.0
          %1365 = vmatprep.subr.mxu0 0.0
          %1366 = vmatpush1.msra.mxu0 0.0
          %1367 = vmatprep.subr.mxu0 0.0
          %1368 = vmatpush1.msra.mxu0 0.0
          %1369 = vmatprep.subr.mxu0 0.0
          %1370 = vmatpush1.msra.mxu0 0.0
          %1371 = vmatprep.subr.mxu0 0.0
          %1372 = vmatpush1.msra.mxu0 0.0
          %1373 = vmatprep.subr.mxu0 0.0
          %1374 = vmatpush1.msra.mxu0 0.0
          %1375 = vmatprep.subr.mxu0 0.0
          %1376 = vmatpush1.msra.mxu0 0.0
          %1377 = vmatprep.subr.mxu0 0.0
          %1378 = vmatpush1.msra.mxu0 0.0
          %1379 = vmatprep.subr.mxu0 0.0
          %1380 = vmatpush1.msra.mxu0 0.0
          %1381 = vmatprep.subr.mxu0 0.0
          %1382 = vmatpush1.msra.mxu0 0.0
          %1383 = vmatprep.subr.mxu0 0.0
          %1384 = vmatpush1.msra.mxu0 0.0
          %1385 = vmatprep.subr.mxu0 0.0
          %1386 = vmatpush1.msra.mxu0 0.0
          %1387 = vmatprep.subr.mxu0 0.0
          %1388 = vmatpush1.msra.mxu0 0.0
          %1389 = vmatprep.mubr.f32.mxu0 0.0
          %1390 = vmatmul.mubr.f32.gmra.mrb[0].mxu0 %v1320
          %v1391 = vpop.f32.mrb[0].mxu0
          %v1392 = vadd.f32 0.0, %v1391
          %v1393 = vpop.f32.mrb[0].mxu0
          %1394 = vmatprep.mubr.f32.mxu0 0.0
          %1395 = vmatmul.mubr.f32.gmra.mrb[0].mxu0 %v1323
          %v1396 = vpop.f32.mrb[0].mxu0
          %v1397 = vadd.f32 0.0, %v1396
          %v1398 = vpop.f32.mrb[0].mxu0
          %1399 = vdwg.mxu0
          %v1400 = vadd.f32 %v1224, %v1392
          %v1401 = vadd.f32 %v1225, %v1397
          %v1402 = vld [vmem:[%s298 + $0x5] sm:$0xff]
          %v1403 = vld [vmem:[%s298 + $0xd] sm:$0xff]
          %s1404 = scalar_lea.vmem [#allocation5], 192
          %v1405 = vld [vmem:[%s1404] sm:$0xff]
          %v1406 = vld [vmem:[%s1404 + $0x8] sm:$0xff]
          %v1408 = vsel %vm456, %v1402, 0
          %v1411 = vsel %vm456, %v1403, 0
          %1413 = vmatprep.subr.mxu0 0.0
          %1414 = vmatpush1.msra.mxu0 %v1405
          %1415 = vmatprep.subr.mxu0 0.0
          %1416 = vmatpush1.msra.mxu0 %v1406
          %1417 = vmatprep.subr.mxu0 0.0
          %1418 = vmatpush1.msra.mxu0 0.0
          %1419 = vmatprep.subr.mxu0 0.0
          %1420 = vmatpush1.msra.mxu0 0.0
          %1421 = vmatprep.subr.mxu0 0.0
          %1422 = vmatpush1.msra.mxu0 0.0
          %1423 = vmatprep.subr.mxu0 0.0
          %1424 = vmatpush1.msra.mxu0 0.0
          %1425 = vmatprep.subr.mxu0 0.0
          %1426 = vmatpush1.msra.mxu0 0.0
          %1427 = vmatprep.subr.mxu0 0.0
          %1428 = vmatpush1.msra.mxu0 0.0
          %1429 = vmatprep.subr.mxu0 0.0
          %1430 = vmatpush1.msra.mxu0 0.0
          %1431 = vmatprep.subr.mxu0 0.0
          %1432 = vmatpush1.msra.mxu0 0.0
          %1433 = vmatprep.subr.mxu0 0.0
          %1434 = vmatpush1.msra.mxu0 0.0
          %1435 = vmatprep.subr.mxu0 0.0
          %1436 = vmatpush1.msra.mxu0 0.0
          %1437 = vmatprep.subr.mxu0 0.0
          %1438 = vmatpush1.msra.mxu0 0.0
          %1439 = vmatprep.subr.mxu0 0.0
          %1440 = vmatpush1.msra.mxu0 0.0
          %1441 = vmatprep.subr.mxu0 0.0
          %1442 = vmatpush1.msra.mxu0 0.0
          %1443 = vmatprep.subr.mxu0 0.0
          %1444 = vmatpush1.msra.mxu0 0.0
          %1445 = vmatprep.subr.mxu0 0.0
          %1446 = vmatpush1.msra.mxu0 0.0
          %1447 = vmatprep.subr.mxu0 0.0
          %1448 = vmatpush1.msra.mxu0 0.0
          %1449 = vmatprep.subr.mxu0 0.0
          %1450 = vmatpush1.msra.mxu0 0.0
          %1451 = vmatprep.subr.mxu0 0.0
          %1452 = vmatpush1.msra.mxu0 0.0
          %1453 = vmatprep.subr.mxu0 0.0
          %1454 = vmatpush1.msra.mxu0 0.0
          %1455 = vmatprep.subr.mxu0 0.0
          %1456 = vmatpush1.msra.mxu0 0.0
          %1457 = vmatprep.subr.mxu0 0.0
          %1458 = vmatpush1.msra.mxu0 0.0
          %1459 = vmatprep.subr.mxu0 0.0
          %1460 = vmatpush1.msra.mxu0 0.0
          %1461 = vmatprep.subr.mxu0 0.0
          %1462 = vmatpush1.msra.mxu0 0.0
          %1463 = vmatprep.subr.mxu0 0.0
          %1464 = vmatpush1.msra.mxu0 0.0
          %1465 = vmatprep.subr.mxu0 0.0
          %1466 = vmatpush1.msra.mxu0 0.0
          %1467 = vmatprep.subr.mxu0 0.0
          %1468 = vmatpush1.msra.mxu0 0.0
          %1469 = vmatprep.subr.mxu0 0.0
          %1470 = vmatpush1.msra.mxu0 0.0
          %1471 = vmatprep.subr.mxu0 0.0
          %1472 = vmatpush1.msra.mxu0 0.0
          %1473 = vmatprep.subr.mxu0 0.0
          %1474 = vmatpush1.msra.mxu0 0.0
          %1475 = vmatprep.subr.mxu0 0.0
          %1476 = vmatpush1.msra.mxu0 0.0
          %1477 = vmatprep.mubr.f32.mxu0 0.0
          %1478 = vmatmul.mubr.f32.gmra.mrb[0].mxu0 %v1408
          %v1479 = vpop.f32.mrb[0].mxu0
          %v1480 = vadd.f32 0.0, %v1479
          %v1481 = vpop.f32.mrb[0].mxu0
          %1482 = vmatprep.mubr.f32.mxu0 0.0
          %1483 = vmatmul.mubr.f32.gmra.mrb[0].mxu0 %v1411
          %v1484 = vpop.f32.mrb[0].mxu0
          %v1485 = vadd.f32 0.0, %v1484
          %v1486 = vpop.f32.mrb[0].mxu0
          %1487 = vdwg.mxu0
          %v1488 = vadd.f32 %v1312, %v1480
          %v1489 = vadd.f32 %v1313, %v1485
          %v1490 = vld [vmem:[#allocation4 + $0x6] sm:$0xff]
          %v1491 = vld [vmem:[#allocation4 + $0xe] sm:$0xff]
          %s1492 = scalar_lea.vmem [#allocation5], 96
          %v1493 = vld [vmem:[%s1492] sm:$0xff]
          %v1494 = vld [vmem:[%s1492 + $0x8] sm:$0xff]
          %v1496 = vsel %vm456, %v1490, 0
          %v1499 = vsel %vm456, %v1491, 0
          %1501 = vmatprep.subr.mxu0 0.0
          %1502 = vmatpush1.msra.mxu0 %v1493
          %1503 = vmatprep.subr.mxu0 0.0
          %1504 = vmatpush1.msra.mxu0 %v1494
          %1505 = vmatprep.subr.mxu0 0.0
          %1506 = vmatpush1.msra.mxu0 0.0
          %1507 = vmatprep.subr.mxu0 0.0
          %1508 = vmatpush1.msra.mxu0 0.0
          %1509 = vmatprep.subr.mxu0 0.0
          %1510 = vmatpush1.msra.mxu0 0.0
          %1511 = vmatprep.subr.mxu0 0.0
          %1512 = vmatpush1.msra.mxu0 0.0
          %1513 = vmatprep.subr.mxu0 0.0
          %1514 = vmatpush1.msra.mxu0 0.0
          %1515 = vmatprep.subr.mxu0 0.0
          %1516 = vmatpush1.msra.mxu0 0.0
          %1517 = vmatprep.subr.mxu0 0.0
          %1518 = vmatpush1.msra.mxu0 0.0
          %1519 = vmatprep.subr.mxu0 0.0
          %1520 = vmatpush1.msra.mxu0 0.0
          %1521 = vmatprep.subr.mxu0 0.0
          %1522 = vmatpush1.msra.mxu0 0.0
          %1523 = vmatprep.subr.mxu0 0.0
          %1524 = vmatpush1.msra.mxu0 0.0
          %1525 = vmatprep.subr.mxu0 0.0
          %1526 = vmatpush1.msra.mxu0 0.0
          %1527 = vmatprep.subr.mxu0 0.0
          %1528 = vmatpush1.msra.mxu0 0.0
          %1529 = vmatprep.subr.mxu0 0.0
          %1530 = vmatpush1.msra.mxu0 0.0
          %1531 = vmatprep.subr.mxu0 0.0
          %1532 = vmatpush1.msra.mxu0 0.0
          %1533 = vmatprep.subr.mxu0 0.0
          %1534 = vmatpush1.msra.mxu0 0.0
          %1535 = vmatprep.subr.mxu0 0.0
          %1536 = vmatpush1.msra.mxu0 0.0
          %1537 = vmatprep.subr.mxu0 0.0
          %1538 = vmatpush1.msra.mxu0 0.0
          %1539 = vmatprep.subr.mxu0 0.0
          %1540 = vmatpush1.msra.mxu0 0.0
          %1541 = vmatprep.subr.mxu0 0.0
          %1542 = vmatpush1.msra.mxu0 0.0
          %1543 = vmatprep.subr.mxu0 0.0
          %1544 = vmatpush1.msra.mxu0 0.0
          %1545 = vmatprep.subr.mxu0 0.0
          %1546 = vmatpush1.msra.mxu0 0.0
          %1547 = vmatprep.subr.mxu0 0.0
          %1548 = vmatpush1.msra.mxu0 0.0
          %1549 = vmatprep.subr.mxu0 0.0
          %1550 = vmatpush1.msra.mxu0 0.0
          %1551 = vmatprep.subr.mxu0 0.0
          %1552 = vmatpush1.msra.mxu0 0.0
          %1553 = vmatprep.subr.mxu0 0.0
          %1554 = vmatpush1.msra.mxu0 0.0
          %1555 = vmatprep.subr.mxu0 0.0
          %1556 = vmatpush1.msra.mxu0 0.0
          %1557 = vmatprep.subr.mxu0 0.0
          %1558 = vmatpush1.msra.mxu0 0.0
          %1559 = vmatprep.subr.mxu0 0.0
          %1560 = vmatpush1.msra.mxu0 0.0
          %1561 = vmatprep.subr.mxu0 0.0
          %1562 = vmatpush1.msra.mxu0 0.0
          %1563 = vmatprep.subr.mxu0 0.0
          %1564 = vmatpush1.msra.mxu0 0.0
          %1565 = vmatprep.mubr.f32.mxu0 0.0
          %1566 = vmatmul.mubr.f32.gmra.mrb[0].mxu0 %v1496
          %v1567 = vpop.f32.mrb[0].mxu0
          %v1568 = vadd.f32 0.0, %v1567
          %v1569 = vpop.f32.mrb[0].mxu0
          %1570 = vmatprep.mubr.f32.mxu0 0.0
          %1571 = vmatmul.mubr.f32.gmra.mrb[0].mxu0 %v1499
          %v1572 = vpop.f32.mrb[0].mxu0
          %v1573 = vadd.f32 0.0, %v1572
          %v1574 = vpop.f32.mrb[0].mxu0
          %1575 = vdwg.mxu0
          %v1576 = vadd.f32 %v1400, %v1568
          %v1577 = vadd.f32 %v1401, %v1573
          %v1578 = vld [vmem:[%s298 + $0x6] sm:$0xff]
          %v1579 = vld [vmem:[%s298 + $0xe] sm:$0xff]
          %s1580 = scalar_lea.vmem [#allocation5], 208
          %v1581 = vld [vmem:[%s1580] sm:$0xff]
          %v1582 = vld [vmem:[%s1580 + $0x8] sm:$0xff]
          %v1584 = vsel %vm456, %v1578, 0
          %v1587 = vsel %vm456, %v1579, 0
          %1589 = vmatprep.subr.mxu0 0.0
          %1590 = vmatpush1.msra.mxu0 %v1581
          %1591 = vmatprep.subr.mxu0 0.0
          %1592 = vmatpush1.msra.mxu0 %v1582
          %1593 = vmatprep.subr.mxu0 0.0
          %1594 = vmatpush1.msra.mxu0 0.0
          %1595 = vmatprep.subr.mxu0 0.0
          %1596 = vmatpush1.msra.mxu0 0.0
          %1597 = vmatprep.subr.mxu0 0.0
          %1598 = vmatpush1.msra.mxu0 0.0
          %1599 = vmatprep.subr.mxu0 0.0
          %1600 = vmatpush1.msra.mxu0 0.0
          %1601 = vmatprep.subr.mxu0 0.0
          %1602 = vmatpush1.msra.mxu0 0.0
          %1603 = vmatprep.subr.mxu0 0.0
          %1604 = vmatpush1.msra.mxu0 0.0
          %1605 = vmatprep.subr.mxu0 0.0
          %1606 = vmatpush1.msra.mxu0 0.0
          %1607 = vmatprep.subr.mxu0 0.0
          %1608 = vmatpush1.msra.mxu0 0.0
          %1609 = vmatprep.subr.mxu0 0.0
          %1610 = vmatpush1.msra.mxu0 0.0
          %1611 = vmatprep.subr.mxu0 0.0
          %1612 = vmatpush1.msra.mxu0 0.0
          %1613 = vmatprep.subr.mxu0 0.0
          %1614 = vmatpush1.msra.mxu0 0.0
          %1615 = vmatprep.subr.mxu0 0.0
          %1616 = vmatpush1.msra.mxu0 0.0
          %1617 = vmatprep.subr.mxu0 0.0
          %1618 = vmatpush1.msra.mxu0 0.0
          %1619 = vmatprep.subr.mxu0 0.0
          %1620 = vmatpush1.msra.mxu0 0.0
          %1621 = vmatprep.subr.mxu0 0.0
          %1622 = vmatpush1.msra.mxu0 0.0
          %1623 = vmatprep.subr.mxu0 0.0
          %1624 = vmatpush1.msra.mxu0 0.0
          %1625 = vmatprep.subr.mxu0 0.0
          %1626 = vmatpush1.msra.mxu0 0.0
          %1627 = vmatprep.subr.mxu0 0.0
          %1628 = vmatpush1.msra.mxu0 0.0
          %1629 = vmatprep.subr.mxu0 0.0
          %1630 = vmatpush1.msra.mxu0 0.0
          %1631 = vmatprep.subr.mxu0 0.0
          %1632 = vmatpush1.msra.mxu0 0.0
          %1633 = vmatprep.subr.mxu0 0.0
          %1634 = vmatpush1.msra.mxu0 0.0
          %1635 = vmatprep.subr.mxu0 0.0
          %1636 = vmatpush1.msra.mxu0 0.0
          %1637 = vmatprep.subr.mxu0 0.0
          %1638 = vmatpush1.msra.mxu0 0.0
          %1639 = vmatprep.subr.mxu0 0.0
          %1640 = vmatpush1.msra.mxu0 0.0
          %1641 = vmatprep.subr.mxu0 0.0
          %1642 = vmatpush1.msra.mxu0 0.0
          %1643 = vmatprep.subr.mxu0 0.0
          %1644 = vmatpush1.msra.mxu0 0.0
          %1645 = vmatprep.subr.mxu0 0.0
          %1646 = vmatpush1.msra.mxu0 0.0
          %1647 = vmatprep.subr.mxu0 0.0
          %1648 = vmatpush1.msra.mxu0 0.0
          %1649 = vmatprep.subr.mxu0 0.0
          %1650 = vmatpush1.msra.mxu0 0.0
          %1651 = vmatprep.subr.mxu0 0.0
          %1652 = vmatpush1.msra.mxu0 0.0
          %1653 = vmatprep.mubr.f32.mxu0 0.0
          %1654 = vmatmul.mubr.f32.gmra.mrb[0].mxu0 %v1584
          %v1655 = vpop.f32.mrb[0].mxu0
          %v1656 = vadd.f32 0.0, %v1655
          %v1657 = vpop.f32.mrb[0].mxu0
          %1658 = vmatprep.mubr.f32.mxu0 0.0
          %1659 = vmatmul.mubr.f32.gmra.mrb[0].mxu0 %v1587
          %v1660 = vpop.f32.mrb[0].mxu0
          %v1661 = vadd.f32 0.0, %v1660
          %v1662 = vpop.f32.mrb[0].mxu0
          %1663 = vdwg.mxu0
          %v1664 = vadd.f32 %v1488, %v1656
          %v1665 = vadd.f32 %v1489, %v1661
          %v1666 = vadd.f32 %v1576, %v1664
          %v1667 = vadd.f32 %v1577, %v1665
          %v1668 = vxor.u32 %v1666, 2147483648
          %v1669 = vxor.u32 %v1667, 2147483648
          %v1670 = vmul.f32 %v1668, 1.442695
          %v1671 = vpow.pop %v1670
          %v1672 = vmul.f32 %v1669, 1.442695
          %v1673 = vpow.pop %v1672
          %v1674 = vadd.f32 %v1671, 1.0
          %v1675 = vadd.f32 %v1673, 1.0
          %v1676 = vrcp.pop %v1674
          %v1677 = vmul.f32 1.0, %v1676
          %v1678 = vrcp.pop %v1675
          %v1679 = vmul.f32 1.0, %v1678
          %1680 = vst.msk [vmem:[%s190] sm:$0xff] %vm456, %v1677
          %1681 = vst.msk [vmem:[%s190 + $0x8] sm:$0xff] %vm456, %v1679
        $region48: #{tpu_custom_call.1} parent=27 // pred_fallthru
          _
        %s1682 = sand.u32 %s89, 1
        %s1683 = scalar_lea.sflag [#allocation7], %s1682
        %s1684 = sand.u32 %s89, 1
        %s1685 = smul.addr %s1684, 16
        %s1686 = scalar_lea.vmem [#allocation10], %s1685
        // Predicated region
        $region49: #{tpu_custom_call.1} parent=27 // pred_check
          %p1687 = pneg %p99
        $region50: #{tpu_custom_call.1} parent=27 // pred_check_branch
          %1689 = sbr.rel (%p1687) target = $region52
        $region51: #{tpu_custom_call.1} parent=27 // pred_region
          %s1691 = ssub.s32 256, 256
          %1692 = vsyncadd %s1683, %s1691
          %s1693 = smul.addr %s24, 2
          %s1694 = smul.addr %s1693, 128
          %s1695 = scalar_lea.hbm %s2, %s1694
          %s1696 = sshll.u32 %s1686, 4
          %s1697 = int_to_ptr.vmem [resolvable:$true] %s1696
          %1702 = dma.vmem_to_hbm [thread:$0]  %s1697, 256, %s1695, %s1683, 128, 128, 8
        $region52: #{tpu_custom_call.1} parent=27 // pred_fallthru
          _
      $region28: #{tpu_custom_call.1} parent=5 // pred_fallthru
        _
      %p1703 = scmp.le.s32.totalorder 2, %s15
      // Predicated region
      $region53: #{tpu_custom_call.1} parent=5 // pred_check
        %p1704 = pneg %p1703
      $region54: #{tpu_custom_call.1} parent=5 // pred_check_branch
        %1706 = sbr.rel (%p1704) target = $region56
      $region55: #{tpu_custom_call.1} parent=5 // pred_region
        %s1707 = ssub.s32 %s15, 2
        // Predicated region
        $region57: #{tpu_custom_call.1} parent=55 // pred_check
          %p1708 = pneg %p105
        $region58: #{tpu_custom_call.1} parent=55 // pred_check_branch
          %1710 = sbr.rel (%p1708) target = $region60
        $region59: #{tpu_custom_call.1} parent=55 // pred_region
          %s1711 = sand.u32 %s90, 1
          %s1712 = scalar_lea.sflag [#allocation7], %s1711
          %s1713 = sand.u32 %s90, 1
          %s1714 = smul.addr %s1713, 16
          %s1715 = scalar_lea.vmem [#allocation10], %s1714
          %1716 = dma.done %s1712, 256
        $region60: #{tpu_custom_call.1} parent=55 // pred_fallthru
          _
      $region56: #{tpu_custom_call.1} parent=5 // pred_fallthru
        _
    $region6: #{tpu_custom_call.1} parent=1 // loop_footer
      %s19 = sadd.s32 1, %s15
    $region7: #{tpu_custom_call.1} parent=1 // loop_footer_branch
      %14 = sbr.rel target = $region3
    $region8: #{tpu_custom_call.1} parent=1 // loop_exit
      _
    %1717 = vsyncpa [#allocation6], 1
    %s1718 = scalar_lea.sflag [#allocation6], 1
    %1719 = vsyncpa %s1718, 1
    %1720 = vsyncpa [#allocation9], 1
    %s1721 = scalar_lea.sflag [#allocation9], 1
    %1722 = vsyncpa %s1721, 1
    %1723 = vsyncpa [#allocation7], 1
    %s1724 = scalar_lea.sflag [#allocation7], 1
    %1725 = vsyncpa %s1724, 1

</llo_original>
